<compile_context>
chip_gen: v7x
topology: tpu7x:2x2x1
jax: 0.10.0
libtpu: 0.0.40
codegen_flags: <defaults>
</compile_context>

<pallas_src>
import functools

import jax
import jax.numpy as jnp
from jax import lax
from jax.experimental import pallas as pl
from jax.experimental.pallas import tpu as pltpu


def _round_up(v, m):
    return (v + m - 1) // m * m


def _pack_conv_weight(w_oihw, cin_pad):
    """(Cout, Cin, 3, 3) f32 -> (Cout, 9*cin_pad) bf16, tap-major / channel-minor, zero-padded."""
    cout, cin, _, _ = w_oihw.shape
    wt = jnp.transpose(w_oihw, (0, 2, 3, 1))                    # (Cout, 3, 3, Cin)
    if cin_pad > cin:
        wt = jnp.pad(wt, ((0, 0), (0, 0), (0, 0), (0, cin_pad - cin)))
    return wt.reshape(cout, 9 * cin_pad).astype(jnp.bfloat16)


# ----------------------------------------------------------------------------
# Fused Block kernel: conv3x3+bias+ReLU -> conv3x3+bias+ReLU (-> fused 2x2 max-pool epilogue)
# ----------------------------------------------------------------------------
def _block_kernel(x_ref, w1_ref, b1_ref, w2_ref, b2_ref, *rest, H, W, pool):
    # x_ref : (1, Cin, H*W)        bf16, flat rows (row stride = W), spatial on lanes
    # w1_ref: (Cmid, 9*Cin) bf16;  b1_ref: (Cmid, 1) f32
    # w2_ref: (Cout, 9*Cmid) bf16; b2_ref: (Cout, 1) f32
    # o_ref : (1, Cout, H2*W) f32  conv2+ReLU, flat with row stride W (cols >= W2 are junk)
    # p_ref : (1, Cout, (2*Hp-1)*W) bf16  2x2 shift-max of y; pooled (i, j) lives at 2*i*W + 2*j
    # scratch: col1 (9*Cin, M1) bf16, h1 (Cmid, H1*W) bf16, col2 (9*Cmid, M2) bf16
    if pool:
        o_ref, p_ref, col1_ref, h1_ref, col2_ref = rest
    else:
        o_ref, col1_ref, h1_ref, col2_ref = rest

    Cin = x_ref.shape[1]
    Cmid = w1_ref.shape[0]
    Cout = w2_ref.shape[0]
    H1, H2 = H - 2, H - 4
    M1 = H1 * W - 2          # every valid conv1 output lives at a flat index < M1
    M2 = H2 * W - 2

    # ---- conv1 as ONE MXU matmul: im2col (9*Cin, M1) from 9 contiguous lane-slices of x ----
    for t in range(9):
        dh, dw = t // 3, t % 3
        col1_ref[pl.ds(t * Cin, Cin), :] = x_ref[0, :, pl.ds(dh * W + dw, M1)]
    h = jnp.dot(w1_ref[...], col1_ref[...], preferred_element_type=jnp.float32)
    h = jnp.maximum(h + b1_ref[...], 0.0)
    h1_ref[:, pl.ds(0, M1)] = h.astype(h1_ref.dtype)
    h1_ref[:, pl.ds(M1, 2)] = jnp.zeros((Cmid, 2), h1_ref.dtype)   # keep tap-slab tail defined

    # ---- conv2 likewise (reads the conv1 activation from VMEM only) ----
    for t in range(9):
        dh, dw = t // 3, t % 3
        col2_ref[pl.ds(t * Cmid, Cmid), :] = h1_ref[:, pl.ds(dh * W + dw, M2)]
    y = jnp.dot(w2_ref[...], col2_ref[...], preferred_element_type=jnp.float32)
    y = jnp.maximum(y + b2_ref[...], 0.0)

    o_ref[0, :, pl.ds(0, M2)] = y.astype(o_ref.dtype)
    o_ref[0, :, pl.ds(M2, 2)] = jnp.zeros((Cout, 2), o_ref.dtype)

    if pool:
        # Fused 2x2 max-pool epilogue: shift-max over rows (+W) and columns (+1); valid pooled
        # values land at flat index 2*i*W + 2*j.  The stride-2 decimation (a lane-strided gather)
        # is done by a tiny XLA slice in the wrapper.  TODO(synk): lane-strided in-kernel stores.
        Hp = H2 // 2
        L = (2 * Hp - 1) * W
        rmax = jnp.maximum(y[:, : M2 - W], y[:, W:])              # row r vs r+1
        cmax = jnp.maximum(rmax[:, : M2 - W - 1], rmax[:, 1:])    # col c vs c+1
        n = min(L, M2 - W - 1)
        p_ref[0, :, pl.ds(0, n)] = cmax[:, :n].astype(p_ref.dtype)
        if L > n:
            p_ref[0, :, pl.ds(n, L - n)] = jnp.zeros((Cout, L - n), p_ref.dtype)


def fused_block(x_nchw, w1, b1, w2, b2, *, pool):
    """x_nchw: (N, C, H, W) bf16; w*: torch OIHW f32; b*: (Cout,) f32.
    Returns (skip (N, Cout, H-4, W-4) f32, pooled (N, Cout, Hp, Wp) bf16 or None)."""
    N, C, H, W = x_nchw.shape
    Cmid, Cout = w1.shape[0], w2.shape[0]
    H1, W1, H2, W2 = H - 2, W - 2, H - 4, W - 4
    assert H2 >= 1 and W2 >= 1, "spatial size too small for two valid 3x3 convs"
    if pool:
        assert H2 >= 2 and W2 >= 2, "spatial size too small for the 2x2 max pool"
    M1, M2 = H1 * W - 2, H2 * W - 2
    Hp, Wp = H2 // 2, W2 // 2

    # Channel padding to sublane multiples keeps the im2col stores aligned; zeros in the padded
    # input channels / weight columns leave the results unchanged.
    Cin_p = _round_up(C, 8)
    Cmid_p = _round_up(Cmid, 8)
    x_flat = x_nchw.reshape(N, C, H * W)                      # free minor-dim reshape
    if Cin_p > C:
        x_flat = jnp.pad(x_flat, ((0, 0), (0, Cin_p - C), (0, 0)))
    w1_full = jnp.pad(w1, ((0, Cmid_p - Cmid), (0, 0), (0, 0), (0, 0))) if Cmid_p > Cmid else w1
    b1_full = jnp.pad(b1, ((0, Cmid_p - Cmid),)) if Cmid_p > Cmid else b1
    w1p = _pack_conv_weight(w1_full, Cin_p)                   # (Cmid_p, 9*Cin_p) bf16
    w2p = _pack_conv_weight(w2, Cmid_p)                       # (Cout,   9*Cmid_p) bf16
    b1c = b1_full.reshape(Cmid_p, 1).astype(jnp.float32)
    b2c = b2.reshape(Cout, 1).astype(jnp.float32)

    out_shape = [jax.ShapeDtypeStruct((N, Cout, H2 * W), jnp.float32)]
    out_specs = [pl.BlockSpec((1, Cout, H2 * W), lambda n: (n, 0, 0))]
    if pool:
        Lp = (2 * Hp - 1) * W
        out_shape.append(jax.ShapeDtypeStruct((N, Cout, Lp), jnp.bfloat16))
        out_specs.append(pl.BlockSpec((1, Cout, Lp), lambda n: (n, 0, 0)))

    kernel = functools.partial(_block_kernel, H=H, W=W, pool=pool)
    outs = pl.pallas_call(
        kernel,
        out_shape=tuple(out_shape) if pool else out_shape[0],
        grid=(N,),
        in_specs=[
            pl.BlockSpec((1, Cin_p, H * W), lambda n: (n, 0, 0)),
            pl.BlockSpec((Cmid_p, 9 * Cin_p), lambda n: (0, 0)),
            pl.BlockSpec((Cmid_p, 1), lambda n: (0, 0)),
            pl.BlockSpec((Cout, 9 * Cmid_p), lambda n: (0, 0)),
            pl.BlockSpec((Cout, 1), lambda n: (0, 0)),
        ],
        out_specs=tuple(out_specs) if pool else out_specs[0],
        scratch_shapes=[
            pltpu.VMEM((9 * Cin_p, M1), jnp.bfloat16),        # conv1 im2col
            pltpu.VMEM((Cmid_p, H1 * W), jnp.bfloat16),       # conv1 activation (never hits HBM)
            pltpu.VMEM((9 * Cmid_p, M2), jnp.bfloat16),       # conv2 im2col
        ],
        compiler_params=pltpu.CompilerParams(dimension_semantics=("parallel",)),
    )(x_flat, w1p, b1c, w2p, b2c)

    skip_raw = outs[0] if pool else outs
    skip = skip_raw.reshape(N, Cout, H2, W)[:, :, :, :W2]     # free reshape + narrow slice -> NCHW
    if not pool:
        return skip, None
    p4 = outs[1].reshape(N, Cout, 2 * Hp - 1, W)              # free reshape
    pooled = p4[:, :, 0:2 * Hp - 1:2, 0:2 * Wp:2]             # tiny XLA strided decimation
    return skip, pooled


# ----------------------------------------------------------------------------
# Encoder (parameters + forward)
# ----------------------------------------------------------------------------
def init_encoder_params(key, channel_pairs):
    """channel_pairs: list of (cin, cout) per Block. Weights stored in torch OIHW layout."""
    params = []
    for cin, cout in channel_pairs:
        key, k1, k2, k3, k4 = jax.random.split(key, 5)
        w1 = 0.1 * jax.random.normal(k1, (cout, cin, 3, 3), jnp.float32)
        b1 = 0.1 * jax.random.normal(k2, (cout,), jnp.float32)
        w2 = 0.1 * jax.random.normal(k3, (cout, cout, 3, 3), jnp.float32)
        b2 = 0.1 * jax.random.normal(k4, (cout,), jnp.float32)
        params.append((w1, b1, w2, b2))
    return params


def encoder_forward(x_nchw, params):
    """Returns the list of per-block pre-pool outputs in NCHW f32, like the PyTorch Encoder."""
    outputs = []
    x = x_nchw.astype(jnp.bfloat16)        # bf16 MXU operands on the main path (f32 accumulation)
    for bi, (w1, b1, w2, b2) in enumerate(params):
        is_last = bi == len(params) - 1
        skip, pooled = fused_block(x, w1, b1, w2, b2, pool=not is_last)
        outputs.append(skip)
        if not is_last:
            x = pooled                     # (N, Cout, Hp, Wp) bf16, feeds the next block
    return outputs


# ----------------------------------------------------------------------------
# Pure-JAX reference (for correctness check)
# ----------------------------------------------------------------------------
def _ref_conv_relu(x, w, b):
    y = lax.conv_general_dilated(x, w, (1, 1), "VALID",
                                 dimension_numbers=("NCHW", "OIHW", "NCHW"))
    return jax.nn.relu(y + b[None, :, None, None])


def _ref_pool(x):
    return lax.reduce_window(x, -jnp.inf, lax.max, (1, 1, 2, 2), (1, 1, 2, 2), "VALID")


def encoder_reference(x, params):
    outs = []
    for (w1, b1, w2, b2) in params:
        x = _ref_conv_relu(x, w1, b1)
        x = _ref_conv_relu(x, w2, b2)
        outs.append(x)
        x = _ref_pool(x)
    return outs


# ----------------------------------------------------------------------------
if __name__ == "__main__":
    key = jax.random.PRNGKey(0)
    kx, kp = jax.random.split(key)

    # Small Encoder: Block(3, 8), Block(8, 16); input NCHW (2, 3, 16, 16)
    channel_pairs = [(3, 8), (8, 16)]
    params = init_encoder_params(kp, channel_pairs)
    x = jax.random.normal(kx, (2, 3, 16, 16), jnp.float32)

    fwd = jax.jit(encoder_forward)
    outs = jax.block_until_ready(fwd(x, params))
    refs = jax.block_until_ready(encoder_reference(x, params))

    for o, r in zip(outs, refs):
        assert o.shape == r.shape and o.dtype == r.dtype, (o.shape, r.shape, o.dtype, r.dtype)
        max_diff = float(jnp.max(jnp.abs(o - r)))
        # Tolerance sized for bf16 MXU operands (f32 accumulation) vs. the all-f32 reference.
        assert max_diff < 5e-2, f"max diff too large: {max_diff}"

    print("KERNEL_OK")
</pallas_src>

<mosaic_0001>
module attributes {stable_mosaic.version = 11 : i64} {
  func.func @_block_kernel(%arg0: i32, %arg1: memref<1x8x256xbf16, #tpu.memory_space<vmem>>, %arg2: memref<8x72xbf16, #tpu.memory_space<vmem>>, %arg3: memref<8x1xf32, #tpu.memory_space<vmem>>, %arg4: memref<8x72xbf16, #tpu.memory_space<vmem>>, %arg5: memref<8x1xf32, #tpu.memory_space<vmem>>, %arg6: memref<1x8x192xf32, #tpu.memory_space<vmem>>, %arg7: memref<1x8x176xbf16, #tpu.memory_space<vmem>>, %arg8: memref<72x222xbf16, #tpu.memory_space<vmem>>, %arg9: memref<8x224xbf16, #tpu.memory_space<vmem>>, %arg10: memref<72x190xbf16, #tpu.memory_space<vmem>>) attributes {dimension_semantics = [#tpu.dimension_semantics<parallel>], iteration_bounds = array<i64: 2>, scalar_prefetch = 0 : i64, scratch_operands = 3 : i64, tpu.core_type = #tpu.core_type<tc>, window_params = [{transform_indices = @transform_0, window_bounds = array<i64: 1, 8, 256>}, {pipeline_mode = #tpu.pipeline_mode<synchronous>, transform_indices = @transform_1, window_bounds = array<i64: 8, 72>}, {pipeline_mode = #tpu.pipeline_mode<synchronous>, transform_indices = @transform_2, window_bounds = array<i64: 8, 1>}, {pipeline_mode = #tpu.pipeline_mode<synchronous>, transform_indices = @transform_3, window_bounds = array<i64: 8, 72>}, {pipeline_mode = #tpu.pipeline_mode<synchronous>, transform_indices = @transform_4, window_bounds = array<i64: 8, 1>}, {transform_indices = @transform_5, window_bounds = array<i64: 1, 8, 192>}, {transform_indices = @transform_6, window_bounds = array<i64: 1, 8, 176>}]} {
    %c0 = arith.constant 0 : index
    %c0_0 = arith.constant 0 : index
    %c0_1 = arith.constant 0 : index
    %0 = vector.load %arg1[%c0, %c0_0, %c0_1] : memref<1x8x256xbf16, #tpu.memory_space<vmem>>, vector<1x8x222xbf16>
    %1 = vector.shape_cast %0 : vector<1x8x222xbf16> to vector<8x222xbf16>
    %c0_2 = arith.constant 0 : index
    %c0_3 = arith.constant 0 : index
    %2 = vector.load %arg8[%c0_2, %c0_3] : memref<72x222xbf16, #tpu.memory_space<vmem>>, vector<8x222xbf16>
    tpu.vector_store %arg8[%c0_2, %c0_3], %1 {strides = array<i32>} : memref<72x222xbf16, #tpu.memory_space<vmem>>, vector<8x222xbf16>,
    %c0_4 = arith.constant 0 : index
    %c0_5 = arith.constant 0 : index
    %c1 = arith.constant 1 : index
    %3 = vector.load %arg1[%c0_4, %c0_5, %c1] : memref<1x8x256xbf16, #tpu.memory_space<vmem>>, vector<1x8x222xbf16>
    %4 = vector.shape_cast %3 : vector<1x8x222xbf16> to vector<8x222xbf16>
    %c8 = arith.constant 8 : index
    %c0_6 = arith.constant 0 : index
    %5 = vector.load %arg8[%c8, %c0_6] : memref<72x222xbf16, #tpu.memory_space<vmem>>, vector<8x222xbf16>
    tpu.vector_store %arg8[%c8, %c0_6], %4 {strides = array<i32>} : memref<72x222xbf16, #tpu.memory_space<vmem>>, vector<8x222xbf16>,
    %c0_7 = arith.constant 0 : index
    %c0_8 = arith.constant 0 : index
    %c2 = arith.constant 2 : index
    %6 = vector.load %arg1[%c0_7, %c0_8, %c2] : memref<1x8x256xbf16, #tpu.memory_space<vmem>>, vector<1x8x222xbf16>
    %7 = vector.shape_cast %6 : vector<1x8x222xbf16> to vector<8x222xbf16>
    %c16 = arith.constant 16 : index
    %c0_9 = arith.constant 0 : index
    %8 = vector.load %arg8[%c16, %c0_9] : memref<72x222xbf16, #tpu.memory_space<vmem>>, vector<8x222xbf16>
    tpu.vector_store %arg8[%c16, %c0_9], %7 {strides = array<i32>} : memref<72x222xbf16, #tpu.memory_space<vmem>>, vector<8x222xbf16>,
    %c0_10 = arith.constant 0 : index
    %c0_11 = arith.constant 0 : index
    %c16_12 = arith.constant 16 : index
    %9 = vector.load %arg1[%c0_10, %c0_11, %c16_12] : memref<1x8x256xbf16, #tpu.memory_space<vmem>>, vector<1x8x222xbf16>
    %10 = vector.shape_cast %9 : vector<1x8x222xbf16> to vector<8x222xbf16>
    %c24 = arith.constant 24 : index
    %c0_13 = arith.constant 0 : index
    %11 = vector.load %arg8[%c24, %c0_13] : memref<72x222xbf16, #tpu.memory_space<vmem>>, vector<8x222xbf16>
    tpu.vector_store %arg8[%c24, %c0_13], %10 {strides = array<i32>} : memref<72x222xbf16, #tpu.memory_space<vmem>>, vector<8x222xbf16>,
    %c0_14 = arith.constant 0 : index
    %c0_15 = arith.constant 0 : index
    %c17 = arith.constant 17 : index
    %12 = vector.load %arg1[%c0_14, %c0_15, %c17] : memref<1x8x256xbf16, #tpu.memory_space<vmem>>, vector<1x8x222xbf16>
    %13 = vector.shape_cast %12 : vector<1x8x222xbf16> to vector<8x222xbf16>
    %c32 = arith.constant 32 : index
    %c0_16 = arith.constant 0 : index
    %14 = vector.load %arg8[%c32, %c0_16] : memref<72x222xbf16, #tpu.memory_space<vmem>>, vector<8x222xbf16>
    tpu.vector_store %arg8[%c32, %c0_16], %13 {strides = array<i32>} : memref<72x222xbf16, #tpu.memory_space<vmem>>, vector<8x222xbf16>,
    %c0_17 = arith.constant 0 : index
    %c0_18 = arith.constant 0 : index
    %c18 = arith.constant 18 : index
    %15 = vector.load %arg1[%c0_17, %c0_18, %c18] : memref<1x8x256xbf16, #tpu.memory_space<vmem>>, vector<1x8x222xbf16>
    %16 = vector.shape_cast %15 : vector<1x8x222xbf16> to vector<8x222xbf16>
    %c40 = arith.constant 40 : index
    %c0_19 = arith.constant 0 : index
    %17 = vector.load %arg8[%c40, %c0_19] : memref<72x222xbf16, #tpu.memory_space<vmem>>, vector<8x222xbf16>
    tpu.vector_store %arg8[%c40, %c0_19], %16 {strides = array<i32>} : memref<72x222xbf16, #tpu.memory_space<vmem>>, vector<8x222xbf16>,
    %c0_20 = arith.constant 0 : index
    %c0_21 = arith.constant 0 : index
    %c32_22 = arith.constant 32 : index
    %18 = vector.load %arg1[%c0_20, %c0_21, %c32_22] : memref<1x8x256xbf16, #tpu.memory_space<vmem>>, vector<1x8x222xbf16>
    %19 = vector.shape_cast %18 : vector<1x8x222xbf16> to vector<8x222xbf16>
    %c48 = arith.constant 48 : index
    %c0_23 = arith.constant 0 : index
    %20 = vector.load %arg8[%c48, %c0_23] : memref<72x222xbf16, #tpu.memory_space<vmem>>, vector<8x222xbf16>
    tpu.vector_store %arg8[%c48, %c0_23], %19 {strides = array<i32>} : memref<72x222xbf16, #tpu.memory_space<vmem>>, vector<8x222xbf16>,
    %c0_24 = arith.constant 0 : index
    %c0_25 = arith.constant 0 : index
    %c33 = arith.constant 33 : index
    %21 = vector.load %arg1[%c0_24, %c0_25, %c33] : memref<1x8x256xbf16, #tpu.memory_space<vmem>>, vector<1x8x222xbf16>
    %22 = vector.shape_cast %21 : vector<1x8x222xbf16> to vector<8x222xbf16>
    %c56 = arith.constant 56 : index
    %c0_26 = arith.constant 0 : index
    %23 = vector.load %arg8[%c56, %c0_26] : memref<72x222xbf16, #tpu.memory_space<vmem>>, vector<8x222xbf16>
    tpu.vector_store %arg8[%c56, %c0_26], %22 {strides = array<i32>} : memref<72x222xbf16, #tpu.memory_space<vmem>>, vector<8x222xbf16>,
    %c0_27 = arith.constant 0 : index
    %c0_28 = arith.constant 0 : index
    %c34 = arith.constant 34 : index
    %24 = vector.load %arg1[%c0_27, %c0_28, %c34] : memref<1x8x256xbf16, #tpu.memory_space<vmem>>, vector<1x8x222xbf16>
    %25 = vector.shape_cast %24 : vector<1x8x222xbf16> to vector<8x222xbf16>
    %c64 = arith.constant 64 : index
    %c0_29 = arith.constant 0 : index
    %26 = vector.load %arg8[%c64, %c0_29] : memref<72x222xbf16, #tpu.memory_space<vmem>>, vector<8x222xbf16>
    tpu.vector_store %arg8[%c64, %c0_29], %25 {strides = array<i32>} : memref<72x222xbf16, #tpu.memory_space<vmem>>, vector<8x222xbf16>,
    %c0_30 = arith.constant 0 : index
    %c0_31 = arith.constant 0 : index
    %27 = vector.load %arg2[%c0_30, %c0_31] : memref<8x72xbf16, #tpu.memory_space<vmem>>, vector<8x72xbf16>
    %c0_32 = arith.constant 0 : index
    %c0_33 = arith.constant 0 : index
    %28 = vector.load %arg8[%c0_32, %c0_33] : memref<72x222xbf16, #tpu.memory_space<vmem>>, vector<72x222xbf16>
    %cst = arith.constant dense<0.000000e+00> : vector<8x222xf32>
    %29 = tpu.matmul %27, %28, %cst {dimension_numbers = #tpu.dot_dimension_numbers<[1], [0], [0], [1], [0, 0, 1, 1], [], []>} : vector<8x72xbf16>, vector<72x222xbf16>, vector<8x222xf32> -> vector<8x222xf32>
    %c0_34 = arith.constant 0 : index
    %c0_35 = arith.constant 0 : index
    %30 = vector.load %arg3[%c0_34, %c0_35] : memref<8x1xf32, #tpu.memory_space<vmem>>, vector<8x1xf32>
    %31 = vector.broadcast %30 : vector<8x1xf32> to vector<8x222xf32>
    %32 = arith.addf %29, %31 : vector<8x222xf32>
    %cst_36 = arith.constant 0.000000e+00 : f32
    %33 = vector.broadcast %cst_36 : f32 to vector<8x222xf32>
    %34 = arith.maximumf %32, %33 : vector<8x222xf32>
    %35 = arith.truncf %34 : vector<8x222xf32> to vector<8x222xbf16>
    %c0_37 = arith.constant 0 : index
    %c0_38 = arith.constant 0 : index
    %36 = vector.load %arg9[%c0_37, %c0_38] : memref<8x224xbf16, #tpu.memory_space<vmem>>, vector<8x222xbf16>
    tpu.vector_store %arg9[%c0_37, %c0_38], %35 {strides = array<i32>} : memref<8x224xbf16, #tpu.memory_space<vmem>>, vector<8x222xbf16>,
    %cst_39 = arith.constant 0.000000e+00 : bf16
    %37 = vector.broadcast %cst_39 : bf16 to vector<8x2xbf16>
    %c0_40 = arith.constant 0 : index
    %c222 = arith.constant 222 : index
    %38 = vector.load %arg9[%c0_40, %c222] : memref<8x224xbf16, #tpu.memory_space<vmem>>, vector<8x2xbf16>
    tpu.vector_store %arg9[%c0_40, %c222], %37 {strides = array<i32>} : memref<8x224xbf16, #tpu.memory_space<vmem>>, vector<8x2xbf16>,
    %c0_41 = arith.constant 0 : index
    %c0_42 = arith.constant 0 : index
    %39 = vector.load %arg9[%c0_41, %c0_42] : memref<8x224xbf16, #tpu.memory_space<vmem>>, vector<8x190xbf16>
    %c0_43 = arith.constant 0 : index
    %c0_44 = arith.constant 0 : index
    %40 = vector.load %arg10[%c0_43, %c0_44] : memref<72x190xbf16, #tpu.memory_space<vmem>>, vector<8x190xbf16>
    tpu.vector_store %arg10[%c0_43, %c0_44], %39 {strides = array<i32>} : memref<72x190xbf16, #tpu.memory_space<vmem>>, vector<8x190xbf16>,
    %c0_45 = arith.constant 0 : index
    %c1_46 = arith.constant 1 : index
    %41 = vector.load %arg9[%c0_45, %c1_46] : memref<8x224xbf16, #tpu.memory_space<vmem>>, vector<8x190xbf16>
    %c8_47 = arith.constant 8 : index
    %c0_48 = arith.constant 0 : index
    %42 = vector.load %arg10[%c8_47, %c0_48] : memref<72x190xbf16, #tpu.memory_space<vmem>>, vector<8x190xbf16>
    tpu.vector_store %arg10[%c8_47, %c0_48], %41 {strides = array<i32>} : memref<72x190xbf16, #tpu.memory_space<vmem>>, vector<8x190xbf16>,
    %c0_49 = arith.constant 0 : index
    %c2_50 = arith.constant 2 : index
    %43 = vector.load %arg9[%c0_49, %c2_50] : memref<8x224xbf16, #tpu.memory_space<vmem>>, vector<8x190xbf16>
    %c16_51 = arith.constant 16 : index
    %c0_52 = arith.constant 0 : index
    %44 = vector.load %arg10[%c16_51, %c0_52] : memref<72x190xbf16, #tpu.memory_space<vmem>>, vector<8x190xbf16>
    tpu.vector_store %arg10[%c16_51, %c0_52], %43 {strides = array<i32>} : memref<72x190xbf16, #tpu.memory_space<vmem>>, vector<8x190xbf16>,
    %c0_53 = arith.constant 0 : index
    %c16_54 = arith.constant 16 : index
    %45 = vector.load %arg9[%c0_53, %c16_54] : memref<8x224xbf16, #tpu.memory_space<vmem>>, vector<8x190xbf16>
    %c24_55 = arith.constant 24 : index
    %c0_56 = arith.constant 0 : index
    %46 = vector.load %arg10[%c24_55, %c0_56] : memref<72x190xbf16, #tpu.memory_space<vmem>>, vector<8x190xbf16>
    tpu.vector_store %arg10[%c24_55, %c0_56], %45 {strides = array<i32>} : memref<72x190xbf16, #tpu.memory_space<vmem>>, vector<8x190xbf16>,
    %c0_57 = arith.constant 0 : index
    %c17_58 = arith.constant 17 : index
    %47 = vector.load %arg9[%c0_57, %c17_58] : memref<8x224xbf16, #tpu.memory_space<vmem>>, vector<8x190xbf16>
    %c32_59 = arith.constant 32 : index
    %c0_60 = arith.constant 0 : index
    %48 = vector.load %arg10[%c32_59, %c0_60] : memref<72x190xbf16, #tpu.memory_space<vmem>>, vector<8x190xbf16>
    tpu.vector_store %arg10[%c32_59, %c0_60], %47 {strides = array<i32>} : memref<72x190xbf16, #tpu.memory_space<vmem>>, vector<8x190xbf16>,
    %c0_61 = arith.constant 0 : index
    %c18_62 = arith.constant 18 : index
    %49 = vector.load %arg9[%c0_61, %c18_62] : memref<8x224xbf16, #tpu.memory_space<vmem>>, vector<8x190xbf16>
    %c40_63 = arith.constant 40 : index
    %c0_64 = arith.constant 0 : index
    %50 = vector.load %arg10[%c40_63, %c0_64] : memref<72x190xbf16, #tpu.memory_space<vmem>>, vector<8x190xbf16>
    tpu.vector_store %arg10[%c40_63, %c0_64], %49 {strides = array<i32>} : memref<72x190xbf16, #tpu.memory_space<vmem>>, vector<8x190xbf16>,
    %c0_65 = arith.constant 0 : index
    %c32_66 = arith.constant 32 : index
    %51 = vector.load %arg9[%c0_65, %c32_66] : memref<8x224xbf16, #tpu.memory_space<vmem>>, vector<8x190xbf16>
    %c48_67 = arith.constant 48 : index
    %c0_68 = arith.constant 0 : index
    %52 = vector.load %arg10[%c48_67, %c0_68] : memref<72x190xbf16, #tpu.memory_space<vmem>>, vector<8x190xbf16>
    tpu.vector_store %arg10[%c48_67, %c0_68], %51 {strides = array<i32>} : memref<72x190xbf16, #tpu.memory_space<vmem>>, vector<8x190xbf16>,
    %c0_69 = arith.constant 0 : index
    %c33_70 = arith.constant 33 : index
    %53 = vector.load %arg9[%c0_69, %c33_70] : memref<8x224xbf16, #tpu.memory_space<vmem>>, vector<8x190xbf16>
    %c56_71 = arith.constant 56 : index
    %c0_72 = arith.constant 0 : index
    %54 = vector.load %arg10[%c56_71, %c0_72] : memref<72x190xbf16, #tpu.memory_space<vmem>>, vector<8x190xbf16>
    tpu.vector_store %arg10[%c56_71, %c0_72], %53 {strides = array<i32>} : memref<72x190xbf16, #tpu.memory_space<vmem>>, vector<8x190xbf16>,
    %c0_73 = arith.constant 0 : index
    %c34_74 = arith.constant 34 : index
    %55 = vector.load %arg9[%c0_73, %c34_74] : memref<8x224xbf16, #tpu.memory_space<vmem>>, vector<8x190xbf16>
    %c64_75 = arith.constant 64 : index
    %c0_76 = arith.constant 0 : index
    %56 = vector.load %arg10[%c64_75, %c0_76] : memref<72x190xbf16, #tpu.memory_space<vmem>>, vector<8x190xbf16>
    tpu.vector_store %arg10[%c64_75, %c0_76], %55 {strides = array<i32>} : memref<72x190xbf16, #tpu.memory_space<vmem>>, vector<8x190xbf16>,
    %c0_77 = arith.constant 0 : index
    %c0_78 = arith.constant 0 : index
    %57 = vector.load %arg4[%c0_77, %c0_78] : memref<8x72xbf16, #tpu.memory_space<vmem>>, vector<8x72xbf16>
    %c0_79 = arith.constant 0 : index
    %c0_80 = arith.constant 0 : index
    %58 = vector.load %arg10[%c0_79, %c0_80] : memref<72x190xbf16, #tpu.memory_space<vmem>>, vector<72x190xbf16>
    %cst_81 = arith.constant dense<0.000000e+00> : vector<8x190xf32>
    %59 = tpu.matmul %57, %58, %cst_81 {dimension_numbers = #tpu.dot_dimension_numbers<[1], [0], [0], [1], [0, 0, 1, 1], [], []>} : vector<8x72xbf16>, vector<72x190xbf16>, vector<8x190xf32> -> vector<8x190xf32>
    %c0_82 = arith.constant 0 : index
    %c0_83 = arith.constant 0 : index
    %60 = vector.load %arg5[%c0_82, %c0_83] : memref<8x1xf32, #tpu.memory_space<vmem>>, vector<8x1xf32>
    %61 = vector.broadcast %60 : vector<8x1xf32> to vector<8x190xf32>
    %62 = arith.addf %59, %61 : vector<8x190xf32>
    %cst_84 = arith.constant 0.000000e+00 : f32
    %63 = vector.broadcast %cst_84 : f32 to vector<8x190xf32>
    %64 = arith.maximumf %62, %63 : vector<8x190xf32>
    %c0_85 = arith.constant 0 : index
    %c0_86 = arith.constant 0 : index
    %c0_87 = arith.constant 0 : index
    %65 = vector.load %arg6[%c0_85, %c0_86, %c0_87] : memref<1x8x192xf32, #tpu.memory_space<vmem>>, vector<1x8x190xf32>
    %66 = vector.shape_cast %65 : vector<1x8x190xf32> to vector<8x190xf32>
    %67 = vector.shape_cast %64 : vector<8x190xf32> to vector<1x8x190xf32>
    tpu.vector_store %arg6[%c0_85, %c0_86, %c0_87], %67 {strides = array<i32>} : memref<1x8x192xf32, #tpu.memory_space<vmem>>, vector<1x8x190xf32>,
    %cst_88 = arith.constant 0.000000e+00 : f32
    %68 = vector.broadcast %cst_88 : f32 to vector<8x2xf32>
    %c0_89 = arith.constant 0 : index
    %c0_90 = arith.constant 0 : index
    %c190 = arith.constant 190 : index
    %69 = vector.load %arg6[%c0_89, %c0_90, %c190] : memref<1x8x192xf32, #tpu.memory_space<vmem>>, vector<1x8x2xf32>
    %70 = vector.shape_cast %69 : vector<1x8x2xf32> to vector<8x2xf32>
    %71 = vector.shape_cast %68 : vector<8x2xf32> to vector<1x8x2xf32>
    tpu.vector_store %arg6[%c0_89, %c0_90, %c190], %71 {strides = array<i32>} : memref<1x8x192xf32, #tpu.memory_space<vmem>>, vector<1x8x2xf32>,
    %72 = vector.extract_strided_slice %64 {offsets = [0, 0], sizes = [8, 174], strides = [1, 1]} : vector<8x190xf32> to vector<8x174xf32>
    %73 = vector.extract_strided_slice %64 {offsets = [0, 16], sizes = [8, 174], strides = [1, 1]} : vector<8x190xf32> to vector<8x174xf32>
    %74 = arith.maximumf %72, %73 : vector<8x174xf32>
    %75 = vector.extract_strided_slice %74 {offsets = [0, 0], sizes = [8, 173], strides = [1, 1]} : vector<8x174xf32> to vector<8x173xf32>
    %76 = vector.extract_strided_slice %74 {offsets = [0, 1], sizes = [8, 173], strides = [1, 1]} : vector<8x174xf32> to vector<8x173xf32>
    %77 = arith.maximumf %75, %76 : vector<8x173xf32>
    %78 = arith.truncf %77 : vector<8x173xf32> to vector<8x173xbf16>
    %c0_91 = arith.constant 0 : index
    %c0_92 = arith.constant 0 : index
    %c0_93 = arith.constant 0 : index
    %79 = vector.load %arg7[%c0_91, %c0_92, %c0_93] : memref<1x8x176xbf16, #tpu.memory_space<vmem>>, vector<1x8x173xbf16>
    %80 = vector.shape_cast %79 : vector<1x8x173xbf16> to vector<8x173xbf16>
    %81 = vector.shape_cast %78 : vector<8x173xbf16> to vector<1x8x173xbf16>
    tpu.vector_store %arg7[%c0_91, %c0_92, %c0_93], %81 {strides = array<i32>} : memref<1x8x176xbf16, #tpu.memory_space<vmem>>, vector<1x8x173xbf16>,
    %cst_94 = arith.constant 0.000000e+00 : bf16
    %82 = vector.broadcast %cst_94 : bf16 to vector<8x3xbf16>
    %c0_95 = arith.constant 0 : index
    %c0_96 = arith.constant 0 : index
    %c173 = arith.constant 173 : index
    %83 = vector.load %arg7[%c0_95, %c0_96, %c173] : memref<1x8x176xbf16, #tpu.memory_space<vmem>>, vector<1x8x3xbf16>
    %84 = vector.shape_cast %83 : vector<1x8x3xbf16> to vector<8x3xbf16>
    %85 = vector.shape_cast %82 : vector<8x3xbf16> to vector<1x8x3xbf16>
    tpu.vector_store %arg7[%c0_95, %c0_96, %c173], %85 {strides = array<i32>} : memref<1x8x176xbf16, #tpu.memory_space<vmem>>, vector<1x8x3xbf16>,
    return
  }
  func.func @transform_0(%arg0: i32) -> (i32, i32, i32) {
    %c0_i32 = arith.constant 0 : i32
    %c0_i32_0 = arith.constant 0 : i32
    %c0_i32_1 = arith.constant 0 : i32
    return %arg0, %c0_i32, %c0_i32_0 : i32, i32, i32
  }
  func.func @transform_1(%arg0: i32) -> (i32, i32) {
    %c0_i32 = arith.constant 0 : i32
    %c0_i32_0 = arith.constant 0 : i32
    %c0_i32_1 = arith.constant 0 : i32
    return %c0_i32, %c0_i32_0 : i32, i32
  }
  func.func @transform_2(%arg0: i32) -> (i32, i32) {
    %c0_i32 = arith.constant 0 : i32
    %c0_i32_0 = arith.constant 0 : i32
    %c0_i32_1 = arith.constant 0 : i32
    return %c0_i32, %c0_i32_0 : i32, i32
  }
  func.func @transform_3(%arg0: i32) -> (i32, i32) {
    %c0_i32 = arith.constant 0 : i32
    %c0_i32_0 = arith.constant 0 : i32
    %c0_i32_1 = arith.constant 0 : i32
    return %c0_i32, %c0_i32_0 : i32, i32
  }
  func.func @transform_4(%arg0: i32) -> (i32, i32) {
    %c0_i32 = arith.constant 0 : i32
    %c0_i32_0 = arith.constant 0 : i32
    %c0_i32_1 = arith.constant 0 : i32
    return %c0_i32, %c0_i32_0 : i32, i32
  }
  func.func @transform_5(%arg0: i32) -> (i32, i32, i32) {
    %c0_i32 = arith.constant 0 : i32
    %c0_i32_0 = arith.constant 0 : i32
    %c0_i32_1 = arith.constant 0 : i32
    return %arg0, %c0_i32, %c0_i32_0 : i32, i32, i32
  }
  func.func @transform_6(%arg0: i32) -> (i32, i32, i32) {
    %c0_i32 = arith.constant 0 : i32
    %c0_i32_0 = arith.constant 0 : i32
    %c0_i32_1 = arith.constant 0 : i32
    return %arg0, %c0_i32, %c0_i32_0 : i32, i32, i32
  }
}

module attributes {stable_mosaic.version = 11 : i64} {
  func.func @_block_kernel(%arg0: i32, %arg1: memref<1x8x36xbf16, #tpu.memory_space<vmem>>, %arg2: memref<16x72xbf16, #tpu.memory_space<vmem>>, %arg3: memref<16x1xf32, #tpu.memory_space<vmem>>, %arg4: memref<16x144xbf16, #tpu.memory_space<vmem>>, %arg5: memref<16x1xf32, #tpu.memory_space<vmem>>, %arg6: memref<1x16x12xf32, #tpu.memory_space<vmem>>, %arg7: memref<72x22xbf16, #tpu.memory_space<vmem>>, %arg8: memref<16x24xbf16, #tpu.memory_space<vmem>>, %arg9: memref<144x10xbf16, #tpu.memory_space<vmem>>) attributes {dimension_semantics = [#tpu.dimension_semantics<parallel>], iteration_bounds = array<i64: 2>, scalar_prefetch = 0 : i64, scratch_operands = 3 : i64, tpu.core_type = #tpu.core_type<tc>, window_params = [{transform_indices = @transform_0, window_bounds = array<i64: 1, 8, 36>}, {pipeline_mode = #tpu.pipeline_mode<synchronous>, transform_indices = @transform_1, window_bounds = array<i64: 16, 72>}, {pipeline_mode = #tpu.pipeline_mode<synchronous>, transform_indices = @transform_2, window_bounds = array<i64: 16, 1>}, {pipeline_mode = #tpu.pipeline_mode<synchronous>, transform_indices = @transform_3, window_bounds = array<i64: 16, 144>}, {pipeline_mode = #tpu.pipeline_mode<synchronous>, transform_indices = @transform_4, window_bounds = array<i64: 16, 1>}, {transform_indices = @transform_5, window_bounds = array<i64: 1, 16, 12>}]} {
    %c0 = arith.constant 0 : index
    %c0_0 = arith.constant 0 : index
    %c0_1 = arith.constant 0 : index
    %0 = vector.load %arg1[%c0, %c0_0, %c0_1] : memref<1x8x36xbf16, #tpu.memory_space<vmem>>, vector<1x8x22xbf16>
    %1 = vector.shape_cast %0 : vector<1x8x22xbf16> to vector<8x22xbf16>
    %c0_2 = arith.constant 0 : index
    %c0_3 = arith.constant 0 : index
    %2 = vector.load %arg7[%c0_2, %c0_3] : memref<72x22xbf16, #tpu.memory_space<vmem>>, vector<8x22xbf16>
    tpu.vector_store %arg7[%c0_2, %c0_3], %1 {strides = array<i32>} : memref<72x22xbf16, #tpu.memory_space<vmem>>, vector<8x22xbf16>,
    %c0_4 = arith.constant 0 : index
    %c0_5 = arith.constant 0 : index
    %c1 = arith.constant 1 : index
    %3 = vector.load %arg1[%c0_4, %c0_5, %c1] : memref<1x8x36xbf16, #tpu.memory_space<vmem>>, vector<1x8x22xbf16>
    %4 = vector.shape_cast %3 : vector<1x8x22xbf16> to vector<8x22xbf16>
    %c8 = arith.constant 8 : index
    %c0_6 = arith.constant 0 : index
    %5 = vector.load %arg7[%c8, %c0_6] : memref<72x22xbf16, #tpu.memory_space<vmem>>, vector<8x22xbf16>
    tpu.vector_store %arg7[%c8, %c0_6], %4 {strides = array<i32>} : memref<72x22xbf16, #tpu.memory_space<vmem>>, vector<8x22xbf16>,
    %c0_7 = arith.constant 0 : index
    %c0_8 = arith.constant 0 : index
    %c2 = arith.constant 2 : index
    %6 = vector.load %arg1[%c0_7, %c0_8, %c2] : memref<1x8x36xbf16, #tpu.memory_space<vmem>>, vector<1x8x22xbf16>
    %7 = vector.shape_cast %6 : vector<1x8x22xbf16> to vector<8x22xbf16>
    %c16 = arith.constant 16 : index
    %c0_9 = arith.constant 0 : index
    %8 = vector.load %arg7[%c16, %c0_9] : memref<72x22xbf16, #tpu.memory_space<vmem>>, vector<8x22xbf16>
    tpu.vector_store %arg7[%c16, %c0_9], %7 {strides = array<i32>} : memref<72x22xbf16, #tpu.memory_space<vmem>>, vector<8x22xbf16>,
    %c0_10 = arith.constant 0 : index
    %c0_11 = arith.constant 0 : index
    %c6 = arith.constant 6 : index
    %9 = vector.load %arg1[%c0_10, %c0_11, %c6] : memref<1x8x36xbf16, #tpu.memory_space<vmem>>, vector<1x8x22xbf16>
    %10 = vector.shape_cast %9 : vector<1x8x22xbf16> to vector<8x22xbf16>
    %c24 = arith.constant 24 : index
    %c0_12 = arith.constant 0 : index
    %11 = vector.load %arg7[%c24, %c0_12] : memref<72x22xbf16, #tpu.memory_space<vmem>>, vector<8x22xbf16>
    tpu.vector_store %arg7[%c24, %c0_12], %10 {strides = array<i32>} : memref<72x22xbf16, #tpu.memory_space<vmem>>, vector<8x22xbf16>,
    %c0_13 = arith.constant 0 : index
    %c0_14 = arith.constant 0 : index
    %c7 = arith.constant 7 : index
    %12 = vector.load %arg1[%c0_13, %c0_14, %c7] : memref<1x8x36xbf16, #tpu.memory_space<vmem>>, vector<1x8x22xbf16>
    %13 = vector.shape_cast %12 : vector<1x8x22xbf16> to vector<8x22xbf16>
    %c32 = arith.constant 32 : index
    %c0_15 = arith.constant 0 : index
    %14 = vector.load %arg7[%c32, %c0_15] : memref<72x22xbf16, #tpu.memory_space<vmem>>, vector<8x22xbf16>
    tpu.vector_store %arg7[%c32, %c0_15], %13 {strides = array<i32>} : memref<72x22xbf16, #tpu.memory_space<vmem>>, vector<8x22xbf16>,
    %c0_16 = arith.constant 0 : index
    %c0_17 = arith.constant 0 : index
    %c8_18 = arith.constant 8 : index
    %15 = vector.load %arg1[%c0_16, %c0_17, %c8_18] : memref<1x8x36xbf16, #tpu.memory_space<vmem>>, vector<1x8x22xbf16>
    %16 = vector.shape_cast %15 : vector<1x8x22xbf16> to vector<8x22xbf16>
    %c40 = arith.constant 40 : index
    %c0_19 = arith.constant 0 : index
    %17 = vector.load %arg7[%c40, %c0_19] : memref<72x22xbf16, #tpu.memory_space<vmem>>, vector<8x22xbf16>
    tpu.vector_store %arg7[%c40, %c0_19], %16 {strides = array<i32>} : memref<72x22xbf16, #tpu.memory_space<vmem>>, vector<8x22xbf16>,
    %c0_20 = arith.constant 0 : index
    %c0_21 = arith.constant 0 : index
    %c12 = arith.constant 12 : index
    %18 = vector.load %arg1[%c0_20, %c0_21, %c12] : memref<1x8x36xbf16, #tpu.memory_space<vmem>>, vector<1x8x22xbf16>
    %19 = vector.shape_cast %18 : vector<1x8x22xbf16> to vector<8x22xbf16>
    %c48 = arith.constant 48 : index
    %c0_22 = arith.constant 0 : index
    %20 = vector.load %arg7[%c48, %c0_22] : memref<72x22xbf16, #tpu.memory_space<vmem>>, vector<8x22xbf16>
    tpu.vector_store %arg7[%c48, %c0_22], %19 {strides = array<i32>} : memref<72x22xbf16, #tpu.memory_space<vmem>>, vector<8x22xbf16>,
    %c0_23 = arith.constant 0 : index
    %c0_24 = arith.constant 0 : index
    %c13 = arith.constant 13 : index
    %21 = vector.load %arg1[%c0_23, %c0_24, %c13] : memref<1x8x36xbf16, #tpu.memory_space<vmem>>, vector<1x8x22xbf16>
    %22 = vector.shape_cast %21 : vector<1x8x22xbf16> to vector<8x22xbf16>
    %c56 = arith.constant 56 : index
    %c0_25 = arith.constant 0 : index
    %23 = vector.load %arg7[%c56, %c0_25] : memref<72x22xbf16, #tpu.memory_space<vmem>>, vector<8x22xbf16>
    tpu.vector_store %arg7[%c56, %c0_25], %22 {strides = array<i32>} : memref<72x22xbf16, #tpu.memory_space<vmem>>, vector<8x22xbf16>,
    %c0_26 = arith.constant 0 : index
    %c0_27 = arith.constant 0 : index
    %c14 = arith.constant 14 : index
    %24 = vector.load %arg1[%c0_26, %c0_27, %c14] : memref<1x8x36xbf16, #tpu.memory_space<vmem>>, vector<1x8x22xbf16>
    %25 = vector.shape_cast %24 : vector<1x8x22xbf16> to vector<8x22xbf16>
    %c64 = arith.constant 64 : index
    %c0_28 = arith.constant 0 : index
    %26 = vector.load %arg7[%c64, %c0_28] : memref<72x22xbf16, #tpu.memory_space<vmem>>, vector<8x22xbf16>
    tpu.vector_store %arg7[%c64, %c0_28], %25 {strides = array<i32>} : memref<72x22xbf16, #tpu.memory_space<vmem>>, vector<8x22xbf16>,
    %c0_29 = arith.constant 0 : index
    %c0_30 = arith.constant 0 : index
    %27 = vector.load %arg2[%c0_29, %c0_30] : memref<16x72xbf16, #tpu.memory_space<vmem>>, vector<16x72xbf16>
    %c0_31 = arith.constant 0 : index
    %c0_32 = arith.constant 0 : index
    %28 = vector.load %arg7[%c0_31, %c0_32] : memref<72x22xbf16, #tpu.memory_space<vmem>>, vector<72x22xbf16>
    %cst = arith.constant dense<0.000000e+00> : vector<16x22xf32>
    %29 = tpu.matmul %27, %28, %cst {dimension_numbers = #tpu.dot_dimension_numbers<[1], [0], [0], [1], [0, 0, 1, 1], [], []>} : vector<16x72xbf16>, vector<72x22xbf16>, vector<16x22xf32> -> vector<16x22xf32>
    %c0_33 = arith.constant 0 : index
    %c0_34 = arith.constant 0 : index
    %30 = vector.load %arg3[%c0_33, %c0_34] : memref<16x1xf32, #tpu.memory_space<vmem>>, vector<16x1xf32>
    %31 = vector.broadcast %30 : vector<16x1xf32> to vector<16x22xf32>
    %32 = arith.addf %29, %31 : vector<16x22xf32>
    %cst_35 = arith.constant 0.000000e+00 : f32
    %33 = vector.broadcast %cst_35 : f32 to vector<16x22xf32>
    %34 = arith.maximumf %32, %33 : vector<16x22xf32>
    %35 = arith.truncf %34 : vector<16x22xf32> to vector<16x22xbf16>
    %c0_36 = arith.constant 0 : index
    %c0_37 = arith.constant 0 : index
    %36 = vector.load %arg8[%c0_36, %c0_37] : memref<16x24xbf16, #tpu.memory_space<vmem>>, vector<16x22xbf16>
    tpu.vector_store %arg8[%c0_36, %c0_37], %35 {strides = array<i32>} : memref<16x24xbf16, #tpu.memory_space<vmem>>, vector<16x22xbf16>,
    %cst_38 = arith.constant 0.000000e+00 : bf16
    %37 = vector.broadcast %cst_38 : bf16 to vector<16x2xbf16>
    %c0_39 = arith.constant 0 : index
    %c22 = arith.constant 22 : index
    %38 = vector.load %arg8[%c0_39, %c22] : memref<16x24xbf16, #tpu.memory_space<vmem>>, vector<16x2xbf16>
    tpu.vector_store %arg8[%c0_39, %c22], %37 {strides = array<i32>} : memref<16x24xbf16, #tpu.memory_space<vmem>>, vector<16x2xbf16>,
    %c0_40 = arith.constant 0 : index
    %c0_41 = arith.constant 0 : index
    %39 = vector.load %arg8[%c0_40, %c0_41] : memref<16x24xbf16, #tpu.memory_space<vmem>>, vector<16x10xbf16>
    %c0_42 = arith.constant 0 : index
    %c0_43 = arith.constant 0 : index
    %40 = vector.load %arg9[%c0_42, %c0_43] : memref<144x10xbf16, #tpu.memory_space<vmem>>, vector<16x10xbf16>
    tpu.vector_store %arg9[%c0_42, %c0_43], %39 {strides = array<i32>} : memref<144x10xbf16, #tpu.memory_space<vmem>>, vector<16x10xbf16>,
    %c0_44 = arith.constant 0 : index
    %c1_45 = arith.constant 1 : index
    %41 = vector.load %arg8[%c0_44, %c1_45] : memref<16x24xbf16, #tpu.memory_space<vmem>>, vector<16x10xbf16>
    %c16_46 = arith.constant 16 : index
    %c0_47 = arith.constant 0 : index
    %42 = vector.load %arg9[%c16_46, %c0_47] : memref<144x10xbf16, #tpu.memory_space<vmem>>, vector<16x10xbf16>
    tpu.vector_store %arg9[%c16_46, %c0_47], %41 {strides = array<i32>} : memref<144x10xbf16, #tpu.memory_space<vmem>>, vector<16x10xbf16>,
    %c0_48 = arith.constant 0 : index
    %c2_49 = arith.constant 2 : index
    %43 = vector.load %arg8[%c0_48, %c2_49] : memref<16x24xbf16, #tpu.memory_space<vmem>>, vector<16x10xbf16>
    %c32_50 = arith.constant 32 : index
    %c0_51 = arith.constant 0 : index
    %44 = vector.load %arg9[%c32_50, %c0_51] : memref<144x10xbf16, #tpu.memory_space<vmem>>, vector<16x10xbf16>
    tpu.vector_store %arg9[%c32_50, %c0_51], %43 {strides = array<i32>} : memref<144x10xbf16, #tpu.memory_space<vmem>>, vector<16x10xbf16>,
    %c0_52 = arith.constant 0 : index
    %c6_53 = arith.constant 6 : index
    %45 = vector.load %arg8[%c0_52, %c6_53] : memref<16x24xbf16, #tpu.memory_space<vmem>>, vector<16x10xbf16>
    %c48_54 = arith.constant 48 : index
    %c0_55 = arith.constant 0 : index
    %46 = vector.load %arg9[%c48_54, %c0_55] : memref<144x10xbf16, #tpu.memory_space<vmem>>, vector<16x10xbf16>
    tpu.vector_store %arg9[%c48_54, %c0_55], %45 {strides = array<i32>} : memref<144x10xbf16, #tpu.memory_space<vmem>>, vector<16x10xbf16>,
    %c0_56 = arith.constant 0 : index
    %c7_57 = arith.constant 7 : index
    %47 = vector.load %arg8[%c0_56, %c7_57] : memref<16x24xbf16, #tpu.memory_space<vmem>>, vector<16x10xbf16>
    %c64_58 = arith.constant 64 : index
    %c0_59 = arith.constant 0 : index
    %48 = vector.load %arg9[%c64_58, %c0_59] : memref<144x10xbf16, #tpu.memory_space<vmem>>, vector<16x10xbf16>
    tpu.vector_store %arg9[%c64_58, %c0_59], %47 {strides = array<i32>} : memref<144x10xbf16, #tpu.memory_space<vmem>>, vector<16x10xbf16>,
    %c0_60 = arith.constant 0 : index
    %c8_61 = arith.constant 8 : index
    %49 = vector.load %arg8[%c0_60, %c8_61] : memref<16x24xbf16, #tpu.memory_space<vmem>>, vector<16x10xbf16>
    %c80 = arith.constant 80 : index
    %c0_62 = arith.constant 0 : index
    %50 = vector.load %arg9[%c80, %c0_62] : memref<144x10xbf16, #tpu.memory_space<vmem>>, vector<16x10xbf16>
    tpu.vector_store %arg9[%c80, %c0_62], %49 {strides = array<i32>} : memref<144x10xbf16, #tpu.memory_space<vmem>>, vector<16x10xbf16>,
    %c0_63 = arith.constant 0 : index
    %c12_64 = arith.constant 12 : index
    %51 = vector.load %arg8[%c0_63, %c12_64] : memref<16x24xbf16, #tpu.memory_space<vmem>>, vector<16x10xbf16>
    %c96 = arith.constant 96 : index
    %c0_65 = arith.constant 0 : index
    %52 = vector.load %arg9[%c96, %c0_65] : memref<144x10xbf16, #tpu.memory_space<vmem>>, vector<16x10xbf16>
    tpu.vector_store %arg9[%c96, %c0_65], %51 {strides = array<i32>} : memref<144x10xbf16, #tpu.memory_space<vmem>>, vector<16x10xbf16>,
    %c0_66 = arith.constant 0 : index
    %c13_67 = arith.constant 13 : index
    %53 = vector.load %arg8[%c0_66, %c13_67] : memref<16x24xbf16, #tpu.memory_space<vmem>>, vector<16x10xbf16>
    %c112 = arith.constant 112 : index
    %c0_68 = arith.constant 0 : index
    %54 = vector.load %arg9[%c112, %c0_68] : memref<144x10xbf16, #tpu.memory_space<vmem>>, vector<16x10xbf16>
    tpu.vector_store %arg9[%c112, %c0_68], %53 {strides = array<i32>} : memref<144x10xbf16, #tpu.memory_space<vmem>>, vector<16x10xbf16>,
    %c0_69 = arith.constant 0 : index
    %c14_70 = arith.constant 14 : index
    %55 = vector.load %arg8[%c0_69, %c14_70] : memref<16x24xbf16, #tpu.memory_space<vmem>>, vector<16x10xbf16>
    %c128 = arith.constant 128 : index
    %c0_71 = arith.constant 0 : index
    %56 = vector.load %arg9[%c128, %c0_71] : memref<144x10xbf16, #tpu.memory_space<vmem>>, vector<16x10xbf16>
    tpu.vector_store %arg9[%c128, %c0_71], %55 {strides = array<i32>} : memref<144x10xbf16, #tpu.memory_space<vmem>>, vector<16x10xbf16>,
    %c0_72 = arith.constant 0 : index
    %c0_73 = arith.constant 0 : index
    %57 = vector.load %arg4[%c0_72, %c0_73] : memref<16x144xbf16, #tpu.memory_space<vmem>>, vector<16x144xbf16>
    %c0_74 = arith.constant 0 : index
    %c0_75 = arith.constant 0 : index
    %58 = vector.load %arg9[%c0_74, %c0_75] : memref<144x10xbf16, #tpu.memory_space<vmem>>, vector<144x10xbf16>
    %cst_76 = arith.constant dense<0.000000e+00> : vector<16x10xf32>
    %59 = tpu.matmul %57, %58, %cst_76 {dimension_numbers = #tpu.dot_dimension_numbers<[1], [0], [0], [1], [0, 0, 1, 1], [], []>} : vector<16x144xbf16>, vector<144x10xbf16>, vector<16x10xf32> -> vector<16x10xf32>
    %c0_77 = arith.constant 0 : index
    %c0_78 = arith.constant 0 : index
    %60 = vector.load %arg5[%c0_77, %c0_78] : memref<16x1xf32, #tpu.memory_space<vmem>>, vector<16x1xf32>
    %61 = vector.broadcast %60 : vector<16x1xf32> to vector<16x10xf32>
    %62 = arith.addf %59, %61 : vector<16x10xf32>
    %cst_79 = arith.constant 0.000000e+00 : f32
    %63 = vector.broadcast %cst_79 : f32 to vector<16x10xf32>
    %64 = arith.maximumf %62, %63 : vector<16x10xf32>
    %c0_80 = arith.constant 0 : index
    %c0_81 = arith.constant 0 : index
    %c0_82 = arith.constant 0 : index
    %65 = vector.load %arg6[%c0_80, %c0_81, %c0_82] : memref<1x16x12xf32, #tpu.memory_space<vmem>>, vector<1x16x10xf32>
    %66 = vector.shape_cast %65 : vector<1x16x10xf32> to vector<16x10xf32>
    %67 = vector.shape_cast %64 : vector<16x10xf32> to vector<1x16x10xf32>
    tpu.vector_store %arg6[%c0_80, %c0_81, %c0_82], %67 {strides = array<i32>} : memref<1x16x12xf32, #tpu.memory_space<vmem>>, vector<1x16x10xf32>,
    %cst_83 = arith.constant 0.000000e+00 : f32
    %68 = vector.broadcast %cst_83 : f32 to vector<16x2xf32>
    %c0_84 = arith.constant 0 : index
    %c0_85 = arith.constant 0 : index
    %c10 = arith.constant 10 : index
    %69 = vector.load %arg6[%c0_84, %c0_85, %c10] : memref<1x16x12xf32, #tpu.memory_space<vmem>>, vector<1x16x2xf32>
    %70 = vector.shape_cast %69 : vector<1x16x2xf32> to vector<16x2xf32>
    %71 = vector.shape_cast %68 : vector<16x2xf32> to vector<1x16x2xf32>
    tpu.vector_store %arg6[%c0_84, %c0_85, %c10], %71 {strides = array<i32>} : memref<1x16x12xf32, #tpu.memory_space<vmem>>, vector<1x16x2xf32>,
    return
  }
  func.func @transform_0(%arg0: i32) -> (i32, i32, i32) {
    %c0_i32 = arith.constant 0 : i32
    %c0_i32_0 = arith.constant 0 : i32
    %c0_i32_1 = arith.constant 0 : i32
    return %arg0, %c0_i32, %c0_i32_0 : i32, i32, i32
  }
  func.func @transform_1(%arg0: i32) -> (i32, i32) {
    %c0_i32 = arith.constant 0 : i32
    %c0_i32_0 = arith.constant 0 : i32
    %c0_i32_1 = arith.constant 0 : i32
    return %c0_i32, %c0_i32_0 : i32, i32
  }
  func.func @transform_2(%arg0: i32) -> (i32, i32) {
    %c0_i32 = arith.constant 0 : i32
    %c0_i32_0 = arith.constant 0 : i32
    %c0_i32_1 = arith.constant 0 : i32
    return %c0_i32, %c0_i32_0 : i32, i32
  }
  func.func @transform_3(%arg0: i32) -> (i32, i32) {
    %c0_i32 = arith.constant 0 : i32
    %c0_i32_0 = arith.constant 0 : i32
    %c0_i32_1 = arith.constant 0 : i32
    return %c0_i32, %c0_i32_0 : i32, i32
  }
  func.func @transform_4(%arg0: i32) -> (i32, i32) {
    %c0_i32 = arith.constant 0 : i32
    %c0_i32_0 = arith.constant 0 : i32
    %c0_i32_1 = arith.constant 0 : i32
    return %c0_i32, %c0_i32_0 : i32, i32
  }
  func.func @transform_5(%arg0: i32) -> (i32, i32, i32) {
    %c0_i32 = arith.constant 0 : i32
    %c0_i32_0 = arith.constant 0 : i32
    %c0_i32_1 = arith.constant 0 : i32
    return %arg0, %c0_i32, %c0_i32_0 : i32, i32, i32
  }
}

</mosaic_0001>

<llo_original>
// kernel: encoder_forward.3
$region0: #{encoder_forward.3}
  #allocation0 [shape = 'u32[]', space=smem, size = 0x4, offset = 0x4, fixed_abs, tag = 'smem constant byte address 0x4 - core index']
  #allocation1 [shape = 'u32[144,128]{1,0:T(1,128)}', space=vmem, size = 0x12000, scoped, tag = 'internal scratch']
  #allocation2 [shape = 'bf16[72,22]{1,0:T(8,128)(2,1)}', space=vmem, size = 0x4800, scoped, tag = 'scratch operand']
  #allocation3 [shape = 'bf16[16,24]{1,0:T(16,128)(2,1)}', space=vmem, size = 0x1000, scoped, tag = 'scratch operand']
  #allocation4 [shape = 'bf16[144,10]{1,0:T(16,128)(2,1)}', space=vmem, size = 0x9000, scoped, tag = 'scratch operand']
  %s0 = inlined_call_operand.vmem [shape: bf16[2,8,36], index: 0, kind: input, shape index: {}]
  %s1 = inlined_call_operand.vmem [shape: bf16[16,72], index: 1, kind: input, shape index: {}]
  %s2 = inlined_call_operand.vmem [shape: f32[16,1], index: 2, kind: input, shape index: {}]
  %s3 = inlined_call_operand.vmem [shape: bf16[16,144], index: 3, kind: input, shape index: {}]
  %s4 = inlined_call_operand.vmem [shape: f32[16,1], index: 4, kind: input, shape index: {}]
  %s5 = inlined_call_operand.vmem [shape: f32[2,16,12], index: 5, kind: output, shape index: {}]
  %s6 = sld [smem:[#allocation0]]
  $region53: #{encoder_forward.3} parent=0
    _
  %s8 = ssub.s32 1, %s6
  %s9 = scalar_select 0, %s8, %s6
  loop: start=0, step=1, limit=4
  $region2: #{encoder_forward.3} parent=0 // loop_pre_header
    _
  $region3: #{encoder_forward.3} parent=0 // loop_header
    %s11 = sphi 0, %s15
    %p12 = scmp.ge.s32.totalorder %s11, 4
    %s21 = sphi 0, %s23
    %s24 = sphi 0, %s21
    %s25 = sphi 0, %s24
    %s41 = sphi 0, %s25
    %s45 = sphi 0, %s45
    %s47 = sphi 0, %s45
    %s48 = sphi 0, %s47
    %s62 = sphi 0, %s48
    %s66 = sphi 0, %s66
    %s68 = sphi 0, %s66
    %s69 = sphi 0, %s68
    %s83 = sphi 0, %s69
    %s87 = sphi 0, %s87
    %s89 = sphi 0, %s87
    %s90 = sphi 0, %s89
    %s104 = sphi 0, %s90
    %s108 = sphi 0, %s108
    %s110 = sphi 0, %s108
    %s111 = sphi 0, %s110
    %s125 = sphi 0, %s111
    %s131 = sphi 0, %s133
    %s134 = sphi 0, %s131
    %s135 = sphi 0, %s134
    %s151 = sphi 0, %s135
  $region4: #{encoder_forward.3} parent=0 // loop_header_branch
    %14 = sbr.rel (%p12) target = $region8
  $region5: #{encoder_forward.3} parent=0 // loop_body
    %s16 = ssub.s32 %s11, 1
    %s17 = ssub.s32 %s11, 2
    %s18 = sadd.s32 %s11, 1
    %s19 = ssub.s32 %s11, %s18
    %p20 = scmp.eq.s32.totalorder %s19, 0
    %s22 = sadd.s32 %s21, 1
    %s23 = scalar_select %p20, %s21, %s22
    %p26 = pneg %p20
    %p27 = scmp.eq.s32.totalorder %s11, 1
    %p28 = por %p26, %p27
    %p29 = scmp.ne.s32.totalorder %s21, %s24
    %p30 = scmp.eq.s32.totalorder %s11, 0
    %p31 = por %p29, %p30
    %p32 = scmp.ne.s32.totalorder %s21, %s24
    %p33 = scmp.eq.s32.totalorder %s16, 1
    %p34 = por %p32, %p33
    %p35 = scmp.ne.s32.totalorder %s24, %s25
    %p36 = scmp.eq.s32.totalorder %s16, 0
    %p37 = por %p35, %p36
    %p38 = scmp.ne.s32.totalorder %s24, %s25
    %p39 = scmp.eq.s32.totalorder %s17, 1
    %p40 = por %p38, %p39
    %p42 = scmp.ne.s32.totalorder %s25, %s41
    %p43 = scmp.eq.s32.totalorder %s17, 0
    %p44 = por %p42, %p43
    %s46 = sadd.s32 %s45, 1
    %p49 = scmp.eq.s32.totalorder %s11, 1
    %p50 = scmp.ne.s32.totalorder %s45, %s47
    %p51 = scmp.eq.s32.totalorder %s11, 0
    %p52 = por %p50, %p51
    %p53 = scmp.ne.s32.totalorder %s45, %s47
    %p54 = scmp.eq.s32.totalorder %s16, 1
    %p55 = por %p53, %p54
    %p56 = scmp.ne.s32.totalorder %s47, %s48
    %p57 = scmp.eq.s32.totalorder %s16, 0
    %p58 = por %p56, %p57
    %p59 = scmp.ne.s32.totalorder %s47, %s48
    %p60 = scmp.eq.s32.totalorder %s17, 1
    %p61 = por %p59, %p60
    %p63 = scmp.ne.s32.totalorder %s48, %s62
    %p64 = scmp.eq.s32.totalorder %s17, 0
    %p65 = por %p63, %p64
    %s67 = sadd.s32 %s66, 1
    %p70 = scmp.eq.s32.totalorder %s11, 1
    %p71 = scmp.ne.s32.totalorder %s66, %s68
    %p72 = scmp.eq.s32.totalorder %s11, 0
    %p73 = por %p71, %p72
    %p74 = scmp.ne.s32.totalorder %s66, %s68
    %p75 = scmp.eq.s32.totalorder %s16, 1
    %p76 = por %p74, %p75
    %p77 = scmp.ne.s32.totalorder %s68, %s69
    %p78 = scmp.eq.s32.totalorder %s16, 0
    %p79 = por %p77, %p78
    %p80 = scmp.ne.s32.totalorder %s68, %s69
    %p81 = scmp.eq.s32.totalorder %s17, 1
    %p82 = por %p80, %p81
    %p84 = scmp.ne.s32.totalorder %s69, %s83
    %p85 = scmp.eq.s32.totalorder %s17, 0
    %p86 = por %p84, %p85
    %s88 = sadd.s32 %s87, 1
    %p91 = scmp.eq.s32.totalorder %s11, 1
    %p92 = scmp.ne.s32.totalorder %s87, %s89
    %p93 = scmp.eq.s32.totalorder %s11, 0
    %p94 = por %p92, %p93
    %p95 = scmp.ne.s32.totalorder %s87, %s89
    %p96 = scmp.eq.s32.totalorder %s16, 1
    %p97 = por %p95, %p96
    %p98 = scmp.ne.s32.totalorder %s89, %s90
    %p99 = scmp.eq.s32.totalorder %s16, 0
    %p100 = por %p98, %p99
    %p101 = scmp.ne.s32.totalorder %s89, %s90
    %p102 = scmp.eq.s32.totalorder %s17, 1
    %p103 = por %p101, %p102
    %p105 = scmp.ne.s32.totalorder %s90, %s104
    %p106 = scmp.eq.s32.totalorder %s17, 0
    %p107 = por %p105, %p106
    %s109 = sadd.s32 %s108, 1
    %p112 = scmp.eq.s32.totalorder %s11, 1
    %p113 = scmp.ne.s32.totalorder %s108, %s110
    %p114 = scmp.eq.s32.totalorder %s11, 0
    %p115 = por %p113, %p114
    %p116 = scmp.ne.s32.totalorder %s108, %s110
    %p117 = scmp.eq.s32.totalorder %s16, 1
    %p118 = por %p116, %p117
    %p119 = scmp.ne.s32.totalorder %s110, %s111
    %p120 = scmp.eq.s32.totalorder %s16, 0
    %p121 = por %p119, %p120
    %p122 = scmp.ne.s32.totalorder %s110, %s111
    %p123 = scmp.eq.s32.totalorder %s17, 1
    %p124 = por %p122, %p123
    %p126 = scmp.ne.s32.totalorder %s111, %s125
    %p127 = scmp.eq.s32.totalorder %s17, 0
    %p128 = por %p126, %p127
    %s129 = ssub.s32 %s11, %s18
    %p130 = scmp.eq.s32.totalorder %s129, 0
    %s132 = sadd.s32 %s131, 1
    %s133 = scalar_select %p130, %s131, %s132
    %p136 = pneg %p130
    %p137 = scmp.eq.s32.totalorder %s11, 1
    %p138 = por %p136, %p137
    %p139 = scmp.ne.s32.totalorder %s131, %s134
    %p140 = scmp.eq.s32.totalorder %s11, 0
    %p141 = por %p139, %p140
    %p142 = scmp.ne.s32.totalorder %s131, %s134
    %p143 = scmp.eq.s32.totalorder %s16, 1
    %p144 = por %p142, %p143
    %p145 = scmp.ne.s32.totalorder %s134, %s135
    %p146 = scmp.eq.s32.totalorder %s16, 0
    %p147 = por %p145, %p146
    %p148 = scmp.ne.s32.totalorder %s134, %s135
    %p149 = scmp.eq.s32.totalorder %s17, 1
    %p150 = por %p148, %p149
    %p152 = scmp.ne.s32.totalorder %s135, %s151
    %p153 = scmp.eq.s32.totalorder %s17, 0
    %p154 = por %p152, %p153
    %p155 = scmp.le.s32.totalorder 1, %s11
    %p156 = scmp.lt.s32.totalorder %s11, 3
    %p157 = pnand %p155, %p156
    %p158 = pneg %p157
    // Predicated region
    $region9: #{encoder_forward.3} parent=5 // pred_check
      _
    $region10: #{encoder_forward.3} parent=5 // pred_check_branch
      %160 = sbr.rel (%p157) target = $region12
    $region11: #{encoder_forward.3} parent=5 // pred_region
      %s161 = ssub.s32 %s11, 1
      // Predicated region
      $region13: #{encoder_forward.3} parent=11 // pred_check
        %p162 = pneg %p58
      $region14: #{encoder_forward.3} parent=11 // pred_check_branch
        %164 = sbr.rel (%p162) target = $region16
      $region15: #{encoder_forward.3} parent=11 // pred_region
        _
      $region16: #{encoder_forward.3} parent=11 // pred_fallthru
        _
      // Predicated region
      $region17: #{encoder_forward.3} parent=11 // pred_check
        %p165 = pneg %p79
      $region18: #{encoder_forward.3} parent=11 // pred_check_branch
        %167 = sbr.rel (%p165) target = $region20
      $region19: #{encoder_forward.3} parent=11 // pred_region
        _
      $region20: #{encoder_forward.3} parent=11 // pred_fallthru
        _
      // Predicated region
      $region21: #{encoder_forward.3} parent=11 // pred_check
        %p168 = pneg %p100
      $region22: #{encoder_forward.3} parent=11 // pred_check_branch
        %170 = sbr.rel (%p168) target = $region24
      $region23: #{encoder_forward.3} parent=11 // pred_region
        _
      $region24: #{encoder_forward.3} parent=11 // pred_fallthru
        _
      // Predicated region
      $region25: #{encoder_forward.3} parent=11 // pred_check
        %p171 = pneg %p121
      $region26: #{encoder_forward.3} parent=11 // pred_check_branch
        %173 = sbr.rel (%p171) target = $region28
      $region27: #{encoder_forward.3} parent=11 // pred_region
        _
      $region28: #{encoder_forward.3} parent=11 // pred_fallthru
        _
    $region12: #{encoder_forward.3} parent=5 // pred_fallthru
      _
    %p174 = scmp.lt.s32.totalorder %s11, 2
    // Predicated region
    $region29: #{encoder_forward.3} parent=5 // pred_check
      %p175 = pneg %p174
    $region30: #{encoder_forward.3} parent=5 // pred_check_branch
      %177 = sbr.rel (%p175) target = $region32
    $region31: #{encoder_forward.3} parent=5 // pred_region
      // Predicated region
      $region33: #{encoder_forward.3} parent=31 // pred_check
        %p178 = pneg %p31
      $region34: #{encoder_forward.3} parent=31 // pred_check_branch
        %180 = sbr.rel (%p178) target = $region36
      $region35: #{encoder_forward.3} parent=31 // pred_region
        %p181 = scmp.lt.s32.totalorder %s11, 1
        %s182 = scalar_select %p181, %s11, 1
        %s183 = smul.addr %s182, 4
        %s184 = scalar_lea.vmem %s0, %s183
      $region36: #{encoder_forward.3} parent=31 // pred_fallthru
        _
    $region32: #{encoder_forward.3} parent=5 // pred_fallthru
      _
    %p185 = scmp.le.s32.totalorder 1, %s11
    %p186 = scmp.lt.s32.totalorder %s11, 3
    %p187 = pnand %p185, %p186
    %p188 = pneg %p187
    // Predicated region
    $region37: #{encoder_forward.3} parent=5 // pred_check
      _
    $region38: #{encoder_forward.3} parent=5 // pred_check_branch
      %190 = sbr.rel (%p187) target = $region40
    $region39: #{encoder_forward.3} parent=5 // pred_region
      %s191 = ssub.s32 %s11, 1
      %p192 = scmp.lt.s32.totalorder %s16, 1
      %s193 = scalar_select %p192, %s16, 1
      %s194 = smul.addr %s193, 4
      %s195 = scalar_lea.vmem %s0, %s194
      %p196 = pneg %p37
      %p197 = pneg %p34
      %p198 = pneg %p58
      %p199 = pneg %p55
      %p200 = pneg %p79
      %p201 = pneg %p76
      %p202 = pneg %p100
      %p203 = pneg %p97
      %p204 = pneg %p121
      %p205 = pneg %p118
      %p206 = pneg %p147
      %p207 = pneg %p144
      %p208 = scmp.lt.s32.totalorder %s16, 1
      %s209 = scalar_select %p208, %s16, 1
      %s210 = smul.addr %s209, 2
      %s211 = smul.addr %s210, 8
      %s212 = scalar_lea.vmem %s5, %s211
      %p213 = scmp.lt.s32.totalorder %s16, 1
      %s214 = scalar_select %p213, %s16, 1
      %s215 = smul.addr %s214, 4
      %s216 = scalar_lea.vmem %s0, %s215
      %p217 = scmp.lt.s32.totalorder %s16, 1
      %s218 = scalar_select %p217, %s16, 1
      %s219 = smul.addr %s218, 2
      %s220 = smul.addr %s219, 8
      %s221 = scalar_lea.vmem %s5, %s220
      %v223 = vld [vmem:[%s216] sm:$0xf]
      %vm224 = vcmask 175104
      %225 = vst.msk [vmem:[#allocation2] sm:$0xf] %vm224, %v223
      %v226 = vld [vmem:[%s216] sm:$0xf]
      %228 = vrot.lane.b32.xlu0 %v226, 127
      %v229 = vpop.permute.xlu0 %228
      %231 = vst.msk [vmem:[#allocation2 + $0x4] sm:$0xf] %vm224, %v229
      %v232 = vld [vmem:[%s216] sm:$0xf]
      %234 = vrot.lane.b32.xlu0 %v232, 126
      %v235 = vpop.permute.xlu0 %234
      %237 = vst.msk [vmem:[#allocation2 + $0x8] sm:$0xf] %vm224, %v235
      %v238 = vld [vmem:[%s216] sm:$0xf]
      %240 = vrot.lane.b32.xlu0 %v238, 122
      %v241 = vpop.permute.xlu0 %240
      %243 = vst.msk [vmem:[#allocation2 + $0xc] sm:$0xf] %vm224, %v241
      %v244 = vld [vmem:[%s216] sm:$0xf]
      %246 = vrot.lane.b32.xlu0 %v244, 121
      %v247 = vpop.permute.xlu0 %246
      %249 = vst.msk [vmem:[#allocation2 + $0x10] sm:$0xf] %vm224, %v247
      %v250 = vld [vmem:[%s216] sm:$0xf]
      %252 = vrot.lane.b32.xlu0 %v250, 120
      %v253 = vpop.permute.xlu0 %252
      %255 = vst.msk [vmem:[#allocation2 + $0x14] sm:$0xf] %vm224, %v253
      %v256 = vld [vmem:[%s216] sm:$0xf]
      %258 = vrot.lane.b32.xlu0 %v256, 116
      %v259 = vpop.permute.xlu0 %258
      %261 = vst.msk [vmem:[#allocation2 + $0x18] sm:$0xf] %vm224, %v259
      %v262 = vld [vmem:[%s216] sm:$0xf]
      %264 = vrot.lane.b32.xlu0 %v262, 115
      %v265 = vpop.permute.xlu0 %264
      %267 = vst.msk [vmem:[#allocation2 + $0x1c] sm:$0xf] %vm224, %v265
      %v268 = vld [vmem:[%s216] sm:$0xf]
      %270 = vrot.lane.b32.xlu0 %v268, 114
      %v271 = vpop.permute.xlu0 %270
      %273 = vst.msk [vmem:[#allocation2 + $0x20] sm:$0xf] %vm224, %v271
      %v274 = vld [vmem:[%s1] sm:$0xf]
      %v275 = vld [vmem:[%s1 + $0x4] sm:$0xf]
      %v276 = vld [vmem:[#allocation2] sm:$0xf]
      %v277 = vld [vmem:[#allocation2 + $0x4] sm:$0xf]
      %v278 = vld [vmem:[#allocation2 + $0x8] sm:$0xf]
      %v279 = vld [vmem:[#allocation2 + $0xc] sm:$0xf]
      %v280 = vld [vmem:[#allocation2 + $0x10] sm:$0xf]
      %v281 = vld [vmem:[#allocation2 + $0x14] sm:$0xf]
      %v282 = vld [vmem:[#allocation2 + $0x18] sm:$0xf]
      %v283 = vld [vmem:[#allocation2 + $0x1c] sm:$0xf]
      %v284 = vld [vmem:[#allocation2 + $0x20] sm:$0xf]
      %v285 = vld [vmem:[%s2] sm:$0xff]
      %v286 = vld [vmem:[%s2 + $0x8] sm:$0xff]
      %288 = vset.pattern.permute.xlu0 0
      %289 = vperm.xlu0 %288, %v285
      %v290 = vpop.permute.xlu0 %289
      %293 = vset.pattern.permute.xlu0 0
      %294 = vperm.xlu0 %293, %v286
      %v295 = vpop.permute.xlu0 %294
      %v299 = vunpack.c.l.b16 %v274
      %v300 = vunpack.c.l.b16 %v275
      %v301 = vpack.c.b16 %v300, %v299
      %v311 = vunpack.c.l.b16 %v276
      %v312 = vunpack.c.l.b16 %v277
      %v313 = vunpack.c.l.b16 %v278
      %v314 = vunpack.c.l.b16 %v279
      %v315 = vunpack.c.l.b16 %v280
      %v316 = vunpack.c.l.b16 %v281
      %v317 = vunpack.c.l.b16 %v282
      %v318 = vunpack.c.l.b16 %v283
      %v319 = vunpack.c.l.b16 %v284
      %v320 = vpack.c.b16 %v312, %v311
      %v321 = vpack.c.b16 %v314, %v313
      %v322 = vpack.c.b16 %v316, %v315
      %v323 = vpack.c.b16 %v318, %v317
      %v324 = vpack.c.b16 %v319, %v319
      %vm329 = vcmask 588800
      %v331 = vsel %vm329, %v301, 0
      %vm333 = vcmask 1043456
      %v335 = vsel %vm333, %v324, 0
      %337 = vmatprep.subr.bf16.mxu0 0
      %338 = vmatpush1.bf16.msra.mxu0 %v320
      %339 = vmatprep.subr.bf16.mxu0 0
      %340 = vmatpush1.bf16.msra.mxu0 %v321
      %341 = vmatprep.subr.bf16.mxu0 0
      %342 = vmatpush1.bf16.msra.mxu0 %v322
      %343 = vmatprep.subr.bf16.mxu0 0
      %344 = vmatpush1.bf16.msra.mxu0 %v323
      %345 = vmatprep.subr.bf16.mxu0 0
      %346 = vmatpush1.bf16.msra.mxu0 %v335
      %347 = vmatprep.subr.bf16.mxu0 0
      %348 = vmatpush1.bf16.msra.mxu0 0
      %349 = vmatprep.subr.bf16.mxu0 0
      %350 = vmatpush1.bf16.msra.mxu0 0
      %351 = vmatprep.subr.bf16.mxu0 0
      %352 = vmatpush1.bf16.msra.mxu0 0
      %353 = vmatprep.subr.bf16.mxu0 0
      %354 = vmatpush1.bf16.msra.mxu0 0
      %355 = vmatprep.subr.bf16.mxu0 0
      %356 = vmatpush1.bf16.msra.mxu0 0
      %357 = vmatprep.subr.bf16.mxu0 0
      %358 = vmatpush1.bf16.msra.mxu0 0
      %359 = vmatprep.subr.bf16.mxu0 0
      %360 = vmatpush1.bf16.msra.mxu0 0
      %361 = vmatprep.subr.bf16.mxu0 0
      %362 = vmatpush1.bf16.msra.mxu0 0
      %363 = vmatprep.subr.bf16.mxu0 0
      %364 = vmatpush1.bf16.msra.mxu0 0
      %365 = vmatprep.subr.bf16.mxu0 0
      %366 = vmatpush1.bf16.msra.mxu0 0
      %367 = vmatprep.subr.bf16.mxu0 0
      %368 = vmatpush1.bf16.msra.mxu0 0
      %369 = vmatprep.mubr.bf16.mxu0 0
      %370 = vmatmul.mubr.bf16.gmra.mrb[0].mxu0 %v331
      %v371 = vpop.f32.mrb[0].mxu0
      %v372 = vadd.f32 %v290, %v371
      %v373 = vpop.f32.mrb[0].mxu0
      %v374 = vpop.f32.mrb[0].mxu0
      %v375 = vadd.f32 %v295, %v374
      %v376 = vpop.f32.mrb[0].mxu0
      %377 = vdwg.mxu0
      %v378 = vmax.f32 %v372, 0.0
      %v379 = vmax.f32 %v375, 0.0
      %v380 = vpack.c.bf16 %v379, %v378
      %vm381 = vcmask 179200
      %382 = vst.msk [vmem:[#allocation3] sm:$0xff] %vm381, %v380
      %vm383 = vcmask 195760
      %384 = vst.msk [vmem:[#allocation3] sm:$0xff] %vm383, 0
      %v385 = vld [vmem:[#allocation3] sm:$0xff]
      %vm386 = vcmask 80896
      %387 = vst.msk [vmem:[#allocation4] sm:$0xff] %vm386, %v385
      %v388 = vld [vmem:[#allocation3] sm:$0xff]
      %390 = vrot.lane.b32.xlu0 %v388, 127
      %v391 = vpop.permute.xlu0 %390
      %393 = vst.msk [vmem:[#allocation4 + $0x8] sm:$0xff] %vm386, %v391
      %v394 = vld [vmem:[#allocation3] sm:$0xff]
      %396 = vrot.lane.b32.xlu0 %v394, 126
      %v397 = vpop.permute.xlu0 %396
      %399 = vst.msk [vmem:[#allocation4 + $0x10] sm:$0xff] %vm386, %v397
      %v400 = vld [vmem:[#allocation3] sm:$0xff]
      %402 = vrot.lane.b32.xlu0 %v400, 122
      %v403 = vpop.permute.xlu0 %402
      %405 = vst.msk [vmem:[#allocation4 + $0x18] sm:$0xff] %vm386, %v403
      %v406 = vld [vmem:[#allocation3] sm:$0xff]
      %408 = vrot.lane.b32.xlu0 %v406, 121
      %v409 = vpop.permute.xlu0 %408
      %411 = vst.msk [vmem:[#allocation4 + $0x20] sm:$0xff] %vm386, %v409
      %v412 = vld [vmem:[#allocation3] sm:$0xff]
      %414 = vrot.lane.b32.xlu0 %v412, 120
      %v415 = vpop.permute.xlu0 %414
      %417 = vst.msk [vmem:[#allocation4 + $0x28] sm:$0xff] %vm386, %v415
      %v418 = vld [vmem:[#allocation3] sm:$0xff]
      %420 = vrot.lane.b32.xlu0 %v418, 116
      %v421 = vpop.permute.xlu0 %420
      %423 = vst.msk [vmem:[#allocation4 + $0x30] sm:$0xff] %vm386, %v421
      %v424 = vld [vmem:[#allocation3] sm:$0xff]
      %426 = vrot.lane.b32.xlu0 %v424, 115
      %v427 = vpop.permute.xlu0 %426
      %429 = vst.msk [vmem:[#allocation4 + $0x38] sm:$0xff] %vm386, %v427
      %v430 = vld [vmem:[#allocation3] sm:$0xff]
      %432 = vrot.lane.b32.xlu0 %v430, 114
      %v433 = vpop.permute.xlu0 %432
      %435 = vst.msk [vmem:[#allocation4 + $0x40] sm:$0xff] %vm386, %v433
      %v436 = vld [vmem:[%s3] sm:$0xff]
      %v437 = vld [vmem:[%s3 + $0x8] sm:$0xff]
      %v438 = vld [vmem:[#allocation4] sm:$0xff]
      %v439 = vld [vmem:[#allocation4 + $0x8] sm:$0xff]
      %v440 = vld [vmem:[#allocation4 + $0x10] sm:$0xff]
      %v441 = vld [vmem:[#allocation4 + $0x18] sm:$0xff]
      %v442 = vld [vmem:[#allocation4 + $0x20] sm:$0xff]
      %v443 = vld [vmem:[#allocation4 + $0x28] sm:$0xff]
      %v444 = vld [vmem:[#allocation4 + $0x30] sm:$0xff]
      %v445 = vld [vmem:[#allocation4 + $0x38] sm:$0xff]
      %v446 = vld [vmem:[#allocation4 + $0x40] sm:$0xff]
      %v447 = vld [vmem:[%s4] sm:$0xff]
      %v448 = vld [vmem:[%s4 + $0x8] sm:$0xff]
      %450 = vset.pattern.permute.xlu0 0
      %451 = vperm.xlu0 %450, %v447
      %v452 = vpop.permute.xlu0 %451
      %455 = vset.pattern.permute.xlu0 0
      %456 = vperm.xlu0 %455, %v448
      %v457 = vpop.permute.xlu0 %456
      %v461 = vunpack.c.l.b16 %v436
      %v462 = vunpack.c.h.b16 %v436
      %v463 = vunpack.c.l.b16 %v437
      %v464 = vunpack.c.h.b16 %v437
      %v465 = vpack.c.b16 %v463, %v461
      %v466 = vpack.c.b16 %v464, %v462
      %vm468 = vcmask 130048
      %v470 = vsel %vm468, %v466, 0
      %472 = vmatprep.subr.bf16.mxu0 0
      %473 = vmatpush1.bf16.msra.mxu0 %v438
      %474 = vmatprep.subr.bf16.mxu0 0
      %475 = vmatpush1.bf16.msra.mxu0 %v439
      %476 = vmatprep.subr.bf16.mxu0 0
      %477 = vmatpush1.bf16.msra.mxu0 %v440
      %478 = vmatprep.subr.bf16.mxu0 0
      %479 = vmatpush1.bf16.msra.mxu0 %v441
      %480 = vmatprep.subr.bf16.mxu0 0
      %481 = vmatpush1.bf16.msra.mxu0 %v442
      %482 = vmatprep.subr.bf16.mxu0 0
      %483 = vmatpush1.bf16.msra.mxu0 %v443
      %484 = vmatprep.subr.bf16.mxu0 0
      %485 = vmatpush1.bf16.msra.mxu0 %v444
      %486 = vmatprep.subr.bf16.mxu0 0
      %487 = vmatpush1.bf16.msra.mxu0 %v445
      %488 = vmatprep.subr.bf16.mxu0 0
      %489 = vmatpush1.bf16.msra.mxu0 %v446
      %490 = vmatprep.subr.bf16.mxu0 0
      %491 = vmatpush1.bf16.msra.mxu0 0
      %492 = vmatprep.subr.bf16.mxu0 0
      %493 = vmatpush1.bf16.msra.mxu0 0
      %494 = vmatprep.subr.bf16.mxu0 0
      %495 = vmatpush1.bf16.msra.mxu0 0
      %496 = vmatprep.subr.bf16.mxu0 0
      %497 = vmatpush1.bf16.msra.mxu0 0
      %498 = vmatprep.subr.bf16.mxu0 0
      %499 = vmatpush1.bf16.msra.mxu0 0
      %500 = vmatprep.subr.bf16.mxu0 0
      %501 = vmatpush1.bf16.msra.mxu0 0
      %502 = vmatprep.subr.bf16.mxu0 0
      %503 = vmatpush1.bf16.msra.mxu0 0
      %504 = vmatprep.mubr.bf16.mxu0 %v470
      %505 = vmatmul.mubr.bf16.gmra.mrb[0].mxu0 %v465
      %v506 = vpop.f32.mrb[0].mxu0
      %v507 = vadd.f32 %v452, %v506
      %v508 = vpop.f32.mrb[0].mxu0
      %v509 = vpop.f32.mrb[0].mxu0
      %v510 = vadd.f32 %v457, %v509
      %v511 = vpop.f32.mrb[0].mxu0
      %512 = vdwg.mxu0
      %v513 = vmax.f32 %v507, 0.0
      %v514 = vmax.f32 %v510, 0.0
      %515 = vst.msk [vmem:[%s221] sm:$0xff] %vm386, %v513
      %516 = vst.msk [vmem:[%s221 + $0x8] sm:$0xff] %vm386, %v514
      %vm517 = vcmask 97360
      %518 = vst.msk [vmem:[%s221] sm:$0xff] %vm517, 0.0
      %519 = vst.msk [vmem:[%s221 + $0x8] sm:$0xff] %vm517, 0.0
      %p520 = scmp.lt.s32.totalorder %s16, 1
      %s521 = scalar_select %p520, %s16, 1
      %s522 = smul.addr %s521, 2
      %s523 = smul.addr %s522, 8
      %s524 = scalar_lea.vmem %s5, %s523
      // Predicated region
      $region41: #{encoder_forward.3} parent=39 // pred_check
        %p525 = pneg %p144
      $region42: #{encoder_forward.3} parent=39 // pred_check_branch
        %527 = sbr.rel (%p525) target = $region44
      $region43: #{encoder_forward.3} parent=39 // pred_region
        _
      $region44: #{encoder_forward.3} parent=39 // pred_fallthru
        _
    $region40: #{encoder_forward.3} parent=5 // pred_fallthru
      _
    %p528 = scmp.le.s32.totalorder 2, %s11
    // Predicated region
    $region45: #{encoder_forward.3} parent=5 // pred_check
      %p529 = pneg %p528
    $region46: #{encoder_forward.3} parent=5 // pred_check_branch
      %531 = sbr.rel (%p529) target = $region48
    $region47: #{encoder_forward.3} parent=5 // pred_region
      %s532 = ssub.s32 %s11, 2
      // Predicated region
      $region49: #{encoder_forward.3} parent=47 // pred_check
        %p533 = pneg %p150
      $region50: #{encoder_forward.3} parent=47 // pred_check_branch
        %535 = sbr.rel (%p533) target = $region52
      $region51: #{encoder_forward.3} parent=47 // pred_region
        %p536 = scmp.lt.s32.totalorder %s17, 1
        %s537 = scalar_select %p536, %s17, 1
        %s538 = smul.addr %s537, 2
        %s539 = smul.addr %s538, 8
        %s540 = scalar_lea.vmem %s5, %s539
      $region52: #{encoder_forward.3} parent=47 // pred_fallthru
        _
    $region48: #{encoder_forward.3} parent=5 // pred_fallthru
      _
  $region6: #{encoder_forward.3} parent=0 // loop_footer
    %s15 = sadd.s32 1, %s11
  $region7: #{encoder_forward.3} parent=0 // loop_footer_branch
    %10 = sbr.rel target = $region3
  $region8: #{encoder_forward.3} parent=0 // loop_exit
    _

// kernel: encoder_forward.2
$region0: #{encoder_forward.2}
  #allocation0 [shape = 'u32[]', space=smem, size = 0x4, offset = 0x4, fixed_abs, tag = 'smem constant byte address 0x4 - core index']
  #allocation1 [shape = 'u32[144,128]{1,0:T(1,128)}', space=vmem, size = 0x12000, scoped, tag = 'internal scratch']
  #allocation2 [shape = 'bf16[72,222]{1,0:T(8,128)(2,1)}', space=vmem, size = 0x9000, scoped, tag = 'scratch operand']
  #allocation3 [shape = 'bf16[8,224]{1,0:T(8,128)(2,1)}', space=vmem, size = 0x1000, scoped, tag = 'scratch operand']
  #allocation4 [shape = 'bf16[72,190]{1,0:T(8,128)(2,1)}', space=vmem, size = 0x9000, scoped, tag = 'scratch operand']
  %s0 = inlined_call_operand.vmem [shape: bf16[2,8,256], index: 0, kind: input, shape index: {}]
  %s1 = inlined_call_operand.vmem [shape: bf16[8,72], index: 1, kind: input, shape index: {}]
  %s2 = inlined_call_operand.vmem [shape: f32[8,1], index: 2, kind: input, shape index: {}]
  %s3 = inlined_call_operand.vmem [shape: bf16[8,72], index: 3, kind: input, shape index: {}]
  %s4 = inlined_call_operand.vmem [shape: f32[8,1], index: 4, kind: input, shape index: {}]
  %s5 = inlined_call_operand.vmem [shape: f32[2,8,192], index: 5, kind: output, shape index: {0}]
  %s6 = inlined_call_operand.vmem [shape: bf16[2,8,176], index: 6, kind: output, shape index: {1}]
  %7 = xla_tuple %s5, %s6
  %s8 = sld [smem:[#allocation0]]
  $region61: #{encoder_forward.2} parent=0
    _
  %s10 = ssub.s32 1, %s8
  %s11 = scalar_select 0, %s10, %s8
  loop: start=0, step=1, limit=4
  $region2: #{encoder_forward.2} parent=0 // loop_pre_header
    _
  $region3: #{encoder_forward.2} parent=0 // loop_header
    %s13 = sphi 0, %s17
    %p14 = scmp.ge.s32.totalorder %s13, 4
    %s23 = sphi 0, %s25
    %s26 = sphi 0, %s23
    %s27 = sphi 0, %s26
    %s43 = sphi 0, %s27
    %s47 = sphi 0, %s47
    %s49 = sphi 0, %s47
    %s50 = sphi 0, %s49
    %s64 = sphi 0, %s50
    %s68 = sphi 0, %s68
    %s70 = sphi 0, %s68
    %s71 = sphi 0, %s70
    %s85 = sphi 0, %s71
    %s89 = sphi 0, %s89
    %s91 = sphi 0, %s89
    %s92 = sphi 0, %s91
    %s106 = sphi 0, %s92
    %s110 = sphi 0, %s110
    %s112 = sphi 0, %s110
    %s113 = sphi 0, %s112
    %s127 = sphi 0, %s113
    %s133 = sphi 0, %s135
    %s136 = sphi 0, %s133
    %s137 = sphi 0, %s136
    %s153 = sphi 0, %s137
    %s159 = sphi 0, %s161
    %s162 = sphi 0, %s159
    %s163 = sphi 0, %s162
    %s179 = sphi 0, %s163
  $region4: #{encoder_forward.2} parent=0 // loop_header_branch
    %16 = sbr.rel (%p14) target = $region8
  $region5: #{encoder_forward.2} parent=0 // loop_body
    %s18 = ssub.s32 %s13, 1
    %s19 = ssub.s32 %s13, 2
    %s20 = sadd.s32 %s13, 1
    %s21 = ssub.s32 %s13, %s20
    %p22 = scmp.eq.s32.totalorder %s21, 0
    %s24 = sadd.s32 %s23, 1
    %s25 = scalar_select %p22, %s23, %s24
    %p28 = pneg %p22
    %p29 = scmp.eq.s32.totalorder %s13, 1
    %p30 = por %p28, %p29
    %p31 = scmp.ne.s32.totalorder %s23, %s26
    %p32 = scmp.eq.s32.totalorder %s13, 0
    %p33 = por %p31, %p32
    %p34 = scmp.ne.s32.totalorder %s23, %s26
    %p35 = scmp.eq.s32.totalorder %s18, 1
    %p36 = por %p34, %p35
    %p37 = scmp.ne.s32.totalorder %s26, %s27
    %p38 = scmp.eq.s32.totalorder %s18, 0
    %p39 = por %p37, %p38
    %p40 = scmp.ne.s32.totalorder %s26, %s27
    %p41 = scmp.eq.s32.totalorder %s19, 1
    %p42 = por %p40, %p41
    %p44 = scmp.ne.s32.totalorder %s27, %s43
    %p45 = scmp.eq.s32.totalorder %s19, 0
    %p46 = por %p44, %p45
    %s48 = sadd.s32 %s47, 1
    %p51 = scmp.eq.s32.totalorder %s13, 1
    %p52 = scmp.ne.s32.totalorder %s47, %s49
    %p53 = scmp.eq.s32.totalorder %s13, 0
    %p54 = por %p52, %p53
    %p55 = scmp.ne.s32.totalorder %s47, %s49
    %p56 = scmp.eq.s32.totalorder %s18, 1
    %p57 = por %p55, %p56
    %p58 = scmp.ne.s32.totalorder %s49, %s50
    %p59 = scmp.eq.s32.totalorder %s18, 0
    %p60 = por %p58, %p59
    %p61 = scmp.ne.s32.totalorder %s49, %s50
    %p62 = scmp.eq.s32.totalorder %s19, 1
    %p63 = por %p61, %p62
    %p65 = scmp.ne.s32.totalorder %s50, %s64
    %p66 = scmp.eq.s32.totalorder %s19, 0
    %p67 = por %p65, %p66
    %s69 = sadd.s32 %s68, 1
    %p72 = scmp.eq.s32.totalorder %s13, 1
    %p73 = scmp.ne.s32.totalorder %s68, %s70
    %p74 = scmp.eq.s32.totalorder %s13, 0
    %p75 = por %p73, %p74
    %p76 = scmp.ne.s32.totalorder %s68, %s70
    %p77 = scmp.eq.s32.totalorder %s18, 1
    %p78 = por %p76, %p77
    %p79 = scmp.ne.s32.totalorder %s70, %s71
    %p80 = scmp.eq.s32.totalorder %s18, 0
    %p81 = por %p79, %p80
    %p82 = scmp.ne.s32.totalorder %s70, %s71
    %p83 = scmp.eq.s32.totalorder %s19, 1
    %p84 = por %p82, %p83
    %p86 = scmp.ne.s32.totalorder %s71, %s85
    %p87 = scmp.eq.s32.totalorder %s19, 0
    %p88 = por %p86, %p87
    %s90 = sadd.s32 %s89, 1
    %p93 = scmp.eq.s32.totalorder %s13, 1
    %p94 = scmp.ne.s32.totalorder %s89, %s91
    %p95 = scmp.eq.s32.totalorder %s13, 0
    %p96 = por %p94, %p95
    %p97 = scmp.ne.s32.totalorder %s89, %s91
    %p98 = scmp.eq.s32.totalorder %s18, 1
    %p99 = por %p97, %p98
    %p100 = scmp.ne.s32.totalorder %s91, %s92
    %p101 = scmp.eq.s32.totalorder %s18, 0
    %p102 = por %p100, %p101
    %p103 = scmp.ne.s32.totalorder %s91, %s92
    %p104 = scmp.eq.s32.totalorder %s19, 1
    %p105 = por %p103, %p104
    %p107 = scmp.ne.s32.totalorder %s92, %s106
    %p108 = scmp.eq.s32.totalorder %s19, 0
    %p109 = por %p107, %p108
    %s111 = sadd.s32 %s110, 1
    %p114 = scmp.eq.s32.totalorder %s13, 1
    %p115 = scmp.ne.s32.totalorder %s110, %s112
    %p116 = scmp.eq.s32.totalorder %s13, 0
    %p117 = por %p115, %p116
    %p118 = scmp.ne.s32.totalorder %s110, %s112
    %p119 = scmp.eq.s32.totalorder %s18, 1
    %p120 = por %p118, %p119
    %p121 = scmp.ne.s32.totalorder %s112, %s113
    %p122 = scmp.eq.s32.totalorder %s18, 0
    %p123 = por %p121, %p122
    %p124 = scmp.ne.s32.totalorder %s112, %s113
    %p125 = scmp.eq.s32.totalorder %s19, 1
    %p126 = por %p124, %p125
    %p128 = scmp.ne.s32.totalorder %s113, %s127
    %p129 = scmp.eq.s32.totalorder %s19, 0
    %p130 = por %p128, %p129
    %s131 = ssub.s32 %s13, %s20
    %p132 = scmp.eq.s32.totalorder %s131, 0
    %s134 = sadd.s32 %s133, 1
    %s135 = scalar_select %p132, %s133, %s134
    %p138 = pneg %p132
    %p139 = scmp.eq.s32.totalorder %s13, 1
    %p140 = por %p138, %p139
    %p141 = scmp.ne.s32.totalorder %s133, %s136
    %p142 = scmp.eq.s32.totalorder %s13, 0
    %p143 = por %p141, %p142
    %p144 = scmp.ne.s32.totalorder %s133, %s136
    %p145 = scmp.eq.s32.totalorder %s18, 1
    %p146 = por %p144, %p145
    %p147 = scmp.ne.s32.totalorder %s136, %s137
    %p148 = scmp.eq.s32.totalorder %s18, 0
    %p149 = por %p147, %p148
    %p150 = scmp.ne.s32.totalorder %s136, %s137
    %p151 = scmp.eq.s32.totalorder %s19, 1
    %p152 = por %p150, %p151
    %p154 = scmp.ne.s32.totalorder %s137, %s153
    %p155 = scmp.eq.s32.totalorder %s19, 0
    %p156 = por %p154, %p155
    %s157 = ssub.s32 %s13, %s20
    %p158 = scmp.eq.s32.totalorder %s157, 0
    %s160 = sadd.s32 %s159, 1
    %s161 = scalar_select %p158, %s159, %s160
    %p164 = pneg %p158
    %p165 = scmp.eq.s32.totalorder %s13, 1
    %p166 = por %p164, %p165
    %p167 = scmp.ne.s32.totalorder %s159, %s162
    %p168 = scmp.eq.s32.totalorder %s13, 0
    %p169 = por %p167, %p168
    %p170 = scmp.ne.s32.totalorder %s159, %s162
    %p171 = scmp.eq.s32.totalorder %s18, 1
    %p172 = por %p170, %p171
    %p173 = scmp.ne.s32.totalorder %s162, %s163
    %p174 = scmp.eq.s32.totalorder %s18, 0
    %p175 = por %p173, %p174
    %p176 = scmp.ne.s32.totalorder %s162, %s163
    %p177 = scmp.eq.s32.totalorder %s19, 1
    %p178 = por %p176, %p177
    %p180 = scmp.ne.s32.totalorder %s163, %s179
    %p181 = scmp.eq.s32.totalorder %s19, 0
    %p182 = por %p180, %p181
    %p183 = scmp.le.s32.totalorder 1, %s13
    %p184 = scmp.lt.s32.totalorder %s13, 3
    %p185 = pnand %p183, %p184
    %p186 = pneg %p185
    // Predicated region
    $region9: #{encoder_forward.2} parent=5 // pred_check
      _
    $region10: #{encoder_forward.2} parent=5 // pred_check_branch
      %188 = sbr.rel (%p185) target = $region12
    $region11: #{encoder_forward.2} parent=5 // pred_region
      %s189 = ssub.s32 %s13, 1
      // Predicated region
      $region13: #{encoder_forward.2} parent=11 // pred_check
        %p190 = pneg %p60
      $region14: #{encoder_forward.2} parent=11 // pred_check_branch
        %192 = sbr.rel (%p190) target = $region16
      $region15: #{encoder_forward.2} parent=11 // pred_region
        _
      $region16: #{encoder_forward.2} parent=11 // pred_fallthru
        _
      // Predicated region
      $region17: #{encoder_forward.2} parent=11 // pred_check
        %p193 = pneg %p81
      $region18: #{encoder_forward.2} parent=11 // pred_check_branch
        %195 = sbr.rel (%p193) target = $region20
      $region19: #{encoder_forward.2} parent=11 // pred_region
        _
      $region20: #{encoder_forward.2} parent=11 // pred_fallthru
        _
      // Predicated region
      $region21: #{encoder_forward.2} parent=11 // pred_check
        %p196 = pneg %p102
      $region22: #{encoder_forward.2} parent=11 // pred_check_branch
        %198 = sbr.rel (%p196) target = $region24
      $region23: #{encoder_forward.2} parent=11 // pred_region
        _
      $region24: #{encoder_forward.2} parent=11 // pred_fallthru
        _
      // Predicated region
      $region25: #{encoder_forward.2} parent=11 // pred_check
        %p199 = pneg %p123
      $region26: #{encoder_forward.2} parent=11 // pred_check_branch
        %201 = sbr.rel (%p199) target = $region28
      $region27: #{encoder_forward.2} parent=11 // pred_region
        _
      $region28: #{encoder_forward.2} parent=11 // pred_fallthru
        _
    $region12: #{encoder_forward.2} parent=5 // pred_fallthru
      _
    %p202 = scmp.lt.s32.totalorder %s13, 2
    // Predicated region
    $region29: #{encoder_forward.2} parent=5 // pred_check
      %p203 = pneg %p202
    $region30: #{encoder_forward.2} parent=5 // pred_check_branch
      %205 = sbr.rel (%p203) target = $region32
    $region31: #{encoder_forward.2} parent=5 // pred_region
      // Predicated region
      $region33: #{encoder_forward.2} parent=31 // pred_check
        %p206 = pneg %p33
      $region34: #{encoder_forward.2} parent=31 // pred_check_branch
        %208 = sbr.rel (%p206) target = $region36
      $region35: #{encoder_forward.2} parent=31 // pred_region
        %p209 = scmp.lt.s32.totalorder %s13, 1
        %s210 = scalar_select %p209, %s13, 1
        %s211 = smul.addr %s210, 2
        %s212 = smul.addr %s211, 4
        %s213 = scalar_lea.vmem %s0, %s212
      $region36: #{encoder_forward.2} parent=31 // pred_fallthru
        _
    $region32: #{encoder_forward.2} parent=5 // pred_fallthru
      _
    %p214 = scmp.le.s32.totalorder 1, %s13
    %p215 = scmp.lt.s32.totalorder %s13, 3
    %p216 = pnand %p214, %p215
    %p217 = pneg %p216
    // Predicated region
    $region37: #{encoder_forward.2} parent=5 // pred_check
      _
    $region38: #{encoder_forward.2} parent=5 // pred_check_branch
      %219 = sbr.rel (%p216) target = $region40
    $region39: #{encoder_forward.2} parent=5 // pred_region
      %s220 = ssub.s32 %s13, 1
      %p221 = scmp.lt.s32.totalorder %s18, 1
      %s222 = scalar_select %p221, %s18, 1
      %s223 = smul.addr %s222, 2
      %s224 = smul.addr %s223, 4
      %s225 = scalar_lea.vmem %s0, %s224
      %p226 = pneg %p39
      %p227 = pneg %p36
      %p228 = pneg %p60
      %p229 = pneg %p57
      %p230 = pneg %p81
      %p231 = pneg %p78
      %p232 = pneg %p102
      %p233 = pneg %p99
      %p234 = pneg %p123
      %p235 = pneg %p120
      %p236 = pneg %p149
      %p237 = pneg %p146
      %p238 = scmp.lt.s32.totalorder %s18, 1
      %s239 = scalar_select %p238, %s18, 1
      %s240 = smul.addr %s239, 2
      %s241 = smul.addr %s240, 8
      %s242 = scalar_lea.vmem %s5, %s241
      %p243 = pneg %p175
      %p244 = pneg %p172
      %p245 = scmp.lt.s32.totalorder %s18, 1
      %s246 = scalar_select %p245, %s18, 1
      %s247 = smul.addr %s246, 2
      %s248 = smul.addr %s247, 4
      %s249 = scalar_lea.vmem %s6, %s248
      %p250 = scmp.lt.s32.totalorder %s18, 1
      %s251 = scalar_select %p250, %s18, 1
      %s252 = smul.addr %s251, 2
      %s253 = smul.addr %s252, 4
      %s254 = scalar_lea.vmem %s0, %s253
      %p255 = scmp.lt.s32.totalorder %s18, 1
      %s256 = scalar_select %p255, %s18, 1
      %s257 = smul.addr %s256, 2
      %s258 = smul.addr %s257, 8
      %s259 = scalar_lea.vmem %s5, %s258
      %p260 = scmp.lt.s32.totalorder %s18, 1
      %s261 = scalar_select %p260, %s18, 1
      %s262 = smul.addr %s261, 2
      %s263 = smul.addr %s262, 4
      %s264 = scalar_lea.vmem %s6, %s263
      %v266 = vld [vmem:[%s254] sm:$0xff]
      %vm267 = vcmask 1043456
      %vm268 = vcmask 769028
      %vm269 = vmor %vm268, %vm267
      %270 = vst.msk [vmem:[#allocation2] sm:$0xff] %vm269, %v266
      %v271 = vld [vmem:[%s254] sm:$0xff]
      %273 = vrot.lane.b32.xlu0 %v271, 127
      %v274 = vpop.permute.xlu0 %273
      %v275 = vrot.slane %v274, 4
      %vm276 = vcmask 1039360
      %v277 = vsel %vm276, %v274, %v275
      %279 = vst.msk [vmem:[#allocation2 + $0x8] sm:$0xff] %vm269, %v277
      %v280 = vld [vmem:[%s254] sm:$0xff]
      %282 = vrot.lane.b32.xlu0 %v280, 126
      %v283 = vpop.permute.xlu0 %282
      %v284 = vrot.slane %v283, 4
      %vm285 = vcmask 1031168
      %v286 = vsel %vm285, %v283, %v284
      %288 = vst.msk [vmem:[#allocation2 + $0x10] sm:$0xff] %vm269, %v286
      %v289 = vld [vmem:[%s254] sm:$0xff]
      %291 = vrot.lane.b32.xlu0 %v289, 112
      %v292 = vpop.permute.xlu0 %291
      %v293 = vrot.slane %v292, 4
      %vm294 = vcmask 916480
      %v295 = vsel %vm294, %v292, %v293
      %297 = vst.msk [vmem:[#allocation2 + $0x18] sm:$0xff] %vm269, %v295
      %v298 = vld [vmem:[%s254] sm:$0xff]
      %300 = vrot.lane.b32.xlu0 %v298, 111
      %v301 = vpop.permute.xlu0 %300
      %v302 = vrot.slane %v301, 4
      %vm303 = vcmask 908288
      %v304 = vsel %vm303, %v301, %v302
      %306 = vst.msk [vmem:[#allocation2 + $0x20] sm:$0xff] %vm269, %v304
      %v307 = vld [vmem:[%s254] sm:$0xff]
      %309 = vrot.lane.b32.xlu0 %v307, 110
      %v310 = vpop.permute.xlu0 %309
      %v311 = vrot.slane %v310, 4
      %vm312 = vcmask 900096
      %v313 = vsel %vm312, %v310, %v311
      %315 = vst.msk [vmem:[#allocation2 + $0x28] sm:$0xff] %vm269, %v313
      %v316 = vld [vmem:[%s254] sm:$0xff]
      %318 = vrot.lane.b32.xlu0 %v316, 96
      %v319 = vpop.permute.xlu0 %318
      %v320 = vrot.slane %v319, 4
      %vm321 = vcmask 785408
      %v322 = vsel %vm321, %v319, %v320
      %324 = vst.msk [vmem:[#allocation2 + $0x30] sm:$0xff] %vm269, %v322
      %v325 = vld [vmem:[%s254] sm:$0xff]
      %327 = vrot.lane.b32.xlu0 %v325, 95
      %v328 = vpop.permute.xlu0 %327
      %v329 = vrot.slane %v328, 4
      %vm330 = vcmask 777216
      %v331 = vsel %vm330, %v328, %v329
      %333 = vst.msk [vmem:[#allocation2 + $0x38] sm:$0xff] %vm269, %v331
      %v334 = vld [vmem:[%s254] sm:$0xff]
      %336 = vrot.lane.b32.xlu0 %v334, 94
      %v337 = vpop.permute.xlu0 %336
      %v338 = vrot.slane %v337, 4
      %vm339 = vcmask 769024
      %v340 = vsel %vm339, %v337, %v338
      %342 = vst.msk [vmem:[#allocation2 + $0x40] sm:$0xff] %vm269, %v340
      %v343 = vld [vmem:[%s1] sm:$0xf]
      %v344 = vld [vmem:[#allocation2] sm:$0xff]
      %v345 = vld [vmem:[#allocation2 + $0x8] sm:$0xff]
      %v346 = vld [vmem:[#allocation2 + $0x10] sm:$0xff]
      %v347 = vld [vmem:[#allocation2 + $0x18] sm:$0xff]
      %v348 = vld [vmem:[#allocation2 + $0x20] sm:$0xff]
      %v349 = vld [vmem:[#allocation2 + $0x28] sm:$0xff]
      %v350 = vld [vmem:[#allocation2 + $0x30] sm:$0xff]
      %v351 = vld [vmem:[#allocation2 + $0x38] sm:$0xff]
      %v352 = vld [vmem:[#allocation2 + $0x40] sm:$0xff]
      %v353 = vld [vmem:[%s2] sm:$0xff]
      %355 = vset.pattern.permute.xlu0 0
      %356 = vperm.xlu0 %355, %v353
      %v357 = vpop.permute.xlu0 %356
      %v368 = vunpack.c.l.b16 %v344
      %v369 = vunpack.c.h.b16 %v344
      %v370 = vunpack.c.l.b16 %v345
      %v371 = vunpack.c.h.b16 %v345
      %v372 = vunpack.c.l.b16 %v346
      %v373 = vunpack.c.h.b16 %v346
      %v374 = vunpack.c.l.b16 %v347
      %v375 = vunpack.c.h.b16 %v347
      %v376 = vunpack.c.l.b16 %v348
      %v377 = vunpack.c.h.b16 %v348
      %v378 = vunpack.c.l.b16 %v349
      %v379 = vunpack.c.h.b16 %v349
      %v380 = vunpack.c.l.b16 %v350
      %v381 = vunpack.c.h.b16 %v350
      %v382 = vunpack.c.l.b16 %v351
      %v383 = vunpack.c.h.b16 %v351
      %v384 = vunpack.c.l.b16 %v352
      %v385 = vunpack.c.h.b16 %v352
      %v386 = vpack.c.b16 %v370, %v368
      %v387 = vpack.c.b16 %v371, %v369
      %v388 = vpack.c.b16 %v374, %v372
      %v389 = vpack.c.b16 %v375, %v373
      %v390 = vpack.c.b16 %v378, %v376
      %v391 = vpack.c.b16 %v379, %v377
      %v392 = vpack.c.b16 %v382, %v380
      %v393 = vpack.c.b16 %v383, %v381
      %v394 = vpack.c.b16 %v384, %v384
      %v395 = vpack.c.b16 %v385, %v385
      %vm404 = vcmask 588800
      %v406 = vsel %vm404, %v343, 0
      %v409 = vsel %vm267, %v394, 0
      %v412 = vsel %vm267, %v395, 0
      %414 = vmatprep.subr.bf16.mxu0 %v387
      %415 = vmatpush1.bf16.msra.mxu0 %v386
      %416 = vmatprep.subr.bf16.mxu0 %v389
      %417 = vmatpush1.bf16.msra.mxu0 %v388
      %418 = vmatprep.subr.bf16.mxu0 %v391
      %419 = vmatpush1.bf16.msra.mxu0 %v390
      %420 = vmatprep.subr.bf16.mxu0 %v393
      %421 = vmatpush1.bf16.msra.mxu0 %v392
      %422 = vmatprep.subr.bf16.mxu0 %v412
      %423 = vmatpush1.bf16.msra.mxu0 %v409
      %424 = vmatprep.subr.bf16.mxu0 0
      %425 = vmatpush1.bf16.msra.mxu0 0
      %426 = vmatprep.subr.bf16.mxu0 0
      %427 = vmatpush1.bf16.msra.mxu0 0
      %428 = vmatprep.subr.bf16.mxu0 0
      %429 = vmatpush1.bf16.msra.mxu0 0
      %430 = vmatprep.subr.bf16.mxu0 0
      %431 = vmatpush1.bf16.msra.mxu0 0
      %432 = vmatprep.subr.bf16.mxu0 0
      %433 = vmatpush1.bf16.msra.mxu0 0
      %434 = vmatprep.subr.bf16.mxu0 0
      %435 = vmatpush1.bf16.msra.mxu0 0
      %436 = vmatprep.subr.bf16.mxu0 0
      %437 = vmatpush1.bf16.msra.mxu0 0
      %438 = vmatprep.subr.bf16.mxu0 0
      %439 = vmatpush1.bf16.msra.mxu0 0
      %440 = vmatprep.subr.bf16.mxu0 0
      %441 = vmatpush1.bf16.msra.mxu0 0
      %442 = vmatprep.subr.bf16.mxu0 0
      %443 = vmatpush1.bf16.msra.mxu0 0
      %444 = vmatprep.subr.bf16.mxu0 0
      %445 = vmatpush1.bf16.msra.mxu0 0
      %446 = vmatprep.mubr.bf16.mxu0 0
      %447 = vmatmul.mubr.bf16.gmra.mrb[0].mxu0 %v406
      %v448 = vpop.f32.mrb[0].mxu0
      %v449 = vadd.f32 %v357, %v448
      %v450 = vpop.f32.mrb[0].mxu0
      %v451 = vadd.f32 %v357, %v450
      %v452 = vpop.f32.mrb[0].mxu0
      %v453 = vpop.f32.mrb[0].mxu0
      %454 = vdwg.mxu0
      %v455 = vmax.f32 %v449, 0.0
      %v456 = vmax.f32 %v451, 0.0
      %v457 = vpack.c.bf16 %v455, %v455
      %v458 = vpack.c.bf16 %v456, %v456
      %v461 = vunpack.c.l.b16 %v457
      %v462 = vunpack.c.l.b16 %v458
      %v463 = vpack.c.b16 %v462, %v461
      %465 = vst.msk [vmem:[#allocation3] sm:$0xff] %vm269, %v463
      %vm466 = vcmask 782064
      %467 = vst.msk [vmem:[#allocation3 + $0x4] sm:$0xf] %vm466, 0
      %v468 = vld [vmem:[#allocation3] sm:$0xff]
      %vm469 = vcmask 506884
      %vm470 = vmor %vm469, %vm267
      %471 = vst.msk [vmem:[#allocation4] sm:$0xff] %vm470, %v468
      %v472 = vld [vmem:[#allocation3] sm:$0xff]
      %474 = vrot.lane.b32.xlu0 %v472, 127
      %v475 = vpop.permute.xlu0 %474
      %v476 = vrot.slane %v475, 4
      %v477 = vsel %vm276, %v475, %v476
      %479 = vst.msk [vmem:[#allocation4 + $0x8] sm:$0xff] %vm470, %v477
      %v480 = vld [vmem:[#allocation3] sm:$0xff]
      %482 = vrot.lane.b32.xlu0 %v480, 126
      %v483 = vpop.permute.xlu0 %482
      %v484 = vrot.slane %v483, 4
      %v485 = vsel %vm285, %v483, %v484
      %487 = vst.msk [vmem:[#allocation4 + $0x10] sm:$0xff] %vm470, %v485
      %v488 = vld [vmem:[#allocation3] sm:$0xff]
      %490 = vrot.lane.b32.xlu0 %v488, 112
      %v491 = vpop.permute.xlu0 %490
      %v492 = vrot.slane %v491, 4
      %v493 = vsel %vm294, %v491, %v492
      %495 = vst.msk [vmem:[#allocation4 + $0x18] sm:$0xff] %vm470, %v493
      %v496 = vld [vmem:[#allocation3] sm:$0xff]
      %498 = vrot.lane.b32.xlu0 %v496, 111
      %v499 = vpop.permute.xlu0 %498
      %v500 = vrot.slane %v499, 4
      %v501 = vsel %vm303, %v499, %v500
      %503 = vst.msk [vmem:[#allocation4 + $0x20] sm:$0xff] %vm470, %v501
      %v504 = vld [vmem:[#allocation3] sm:$0xff]
      %506 = vrot.lane.b32.xlu0 %v504, 110
      %v507 = vpop.permute.xlu0 %506
      %v508 = vrot.slane %v507, 4
      %v509 = vsel %vm312, %v507, %v508
      %511 = vst.msk [vmem:[#allocation4 + $0x28] sm:$0xff] %vm470, %v509
      %v512 = vld [vmem:[#allocation3] sm:$0xff]
      %514 = vrot.lane.b32.xlu0 %v512, 96
      %v515 = vpop.permute.xlu0 %514
      %v516 = vrot.slane %v515, 4
      %v517 = vsel %vm321, %v515, %v516
      %519 = vst.msk [vmem:[#allocation4 + $0x30] sm:$0xff] %vm470, %v517
      %v520 = vld [vmem:[#allocation3] sm:$0xff]
      %522 = vrot.lane.b32.xlu0 %v520, 95
      %v523 = vpop.permute.xlu0 %522
      %v524 = vrot.slane %v523, 4
      %v525 = vsel %vm330, %v523, %v524
      %527 = vst.msk [vmem:[#allocation4 + $0x38] sm:$0xff] %vm470, %v525
      %v528 = vld [vmem:[#allocation3] sm:$0xff]
      %530 = vrot.lane.b32.xlu0 %v528, 94
      %v531 = vpop.permute.xlu0 %530
      %v532 = vrot.slane %v531, 4
      %v533 = vsel %vm339, %v531, %v532
      %535 = vst.msk [vmem:[#allocation4 + $0x40] sm:$0xff] %vm470, %v533
      %v536 = vld [vmem:[%s3] sm:$0xf]
      %v537 = vld [vmem:[#allocation4] sm:$0xff]
      %v538 = vld [vmem:[#allocation4 + $0x8] sm:$0xff]
      %v539 = vld [vmem:[#allocation4 + $0x10] sm:$0xff]
      %v540 = vld [vmem:[#allocation4 + $0x18] sm:$0xff]
      %v541 = vld [vmem:[#allocation4 + $0x20] sm:$0xff]
      %v542 = vld [vmem:[#allocation4 + $0x28] sm:$0xff]
      %v543 = vld [vmem:[#allocation4 + $0x30] sm:$0xff]
      %v544 = vld [vmem:[#allocation4 + $0x38] sm:$0xff]
      %v545 = vld [vmem:[#allocation4 + $0x40] sm:$0xff]
      %v546 = vld [vmem:[%s4] sm:$0xff]
      %548 = vset.pattern.permute.xlu0 0
      %549 = vperm.xlu0 %548, %v546
      %v550 = vpop.permute.xlu0 %549
      %v561 = vunpack.c.l.b16 %v537
      %v562 = vunpack.c.h.b16 %v537
      %v563 = vunpack.c.l.b16 %v538
      %v564 = vunpack.c.h.b16 %v538
      %v565 = vunpack.c.l.b16 %v539
      %v566 = vunpack.c.h.b16 %v539
      %v567 = vunpack.c.l.b16 %v540
      %v568 = vunpack.c.h.b16 %v540
      %v569 = vunpack.c.l.b16 %v541
      %v570 = vunpack.c.h.b16 %v541
      %v571 = vunpack.c.l.b16 %v542
      %v572 = vunpack.c.h.b16 %v542
      %v573 = vunpack.c.l.b16 %v543
      %v574 = vunpack.c.h.b16 %v543
      %v575 = vunpack.c.l.b16 %v544
      %v576 = vunpack.c.h.b16 %v544
      %v577 = vunpack.c.l.b16 %v545
      %v578 = vunpack.c.h.b16 %v545
      %v579 = vpack.c.b16 %v563, %v561
      %v580 = vpack.c.b16 %v564, %v562
      %v581 = vpack.c.b16 %v567, %v565
      %v582 = vpack.c.b16 %v568, %v566
      %v583 = vpack.c.b16 %v571, %v569
      %v584 = vpack.c.b16 %v572, %v570
      %v585 = vpack.c.b16 %v575, %v573
      %v586 = vpack.c.b16 %v576, %v574
      %v587 = vpack.c.b16 %v577, %v577
      %v588 = vpack.c.b16 %v578, %v578
      %v598 = vsel %vm404, %v536, 0
      %v601 = vsel %vm267, %v587, 0
      %v604 = vsel %vm267, %v588, 0
      %606 = vmatprep.subr.bf16.mxu0 %v580
      %607 = vmatpush1.bf16.msra.mxu0 %v579
      %608 = vmatprep.subr.bf16.mxu0 %v582
      %609 = vmatpush1.bf16.msra.mxu0 %v581
      %610 = vmatprep.subr.bf16.mxu0 %v584
      %611 = vmatpush1.bf16.msra.mxu0 %v583
      %612 = vmatprep.subr.bf16.mxu0 %v586
      %613 = vmatpush1.bf16.msra.mxu0 %v585
      %614 = vmatprep.subr.bf16.mxu0 %v604
      %615 = vmatpush1.bf16.msra.mxu0 %v601
      %616 = vmatprep.subr.bf16.mxu0 0
      %617 = vmatpush1.bf16.msra.mxu0 0
      %618 = vmatprep.subr.bf16.mxu0 0
      %619 = vmatpush1.bf16.msra.mxu0 0
      %620 = vmatprep.subr.bf16.mxu0 0
      %621 = vmatpush1.bf16.msra.mxu0 0
      %622 = vmatprep.subr.bf16.mxu0 0
      %623 = vmatpush1.bf16.msra.mxu0 0
      %624 = vmatprep.subr.bf16.mxu0 0
      %625 = vmatpush1.bf16.msra.mxu0 0
      %626 = vmatprep.subr.bf16.mxu0 0
      %627 = vmatpush1.bf16.msra.mxu0 0
      %628 = vmatprep.subr.bf16.mxu0 0
      %629 = vmatpush1.bf16.msra.mxu0 0
      %630 = vmatprep.subr.bf16.mxu0 0
      %631 = vmatpush1.bf16.msra.mxu0 0
      %632 = vmatprep.subr.bf16.mxu0 0
      %633 = vmatpush1.bf16.msra.mxu0 0
      %634 = vmatprep.subr.bf16.mxu0 0
      %635 = vmatpush1.bf16.msra.mxu0 0
      %636 = vmatprep.subr.bf16.mxu0 0
      %637 = vmatpush1.bf16.msra.mxu0 0
      %638 = vmatprep.mubr.bf16.mxu0 0
      %639 = vmatmul.mubr.bf16.gmra.mrb[0].mxu0 %v598
      %v640 = vpop.f32.mrb[0].mxu0
      %v641 = vadd.f32 %v550, %v640
      %v642 = vpop.f32.mrb[0].mxu0
      %v643 = vadd.f32 %v550, %v642
      %v644 = vpop.f32.mrb[0].mxu0
      %v645 = vpop.f32.mrb[0].mxu0
      %646 = vdwg.mxu0
      %v647 = vmax.f32 %v641, 0.0
      %v648 = vmax.f32 %v643, 0.0
      %649 = vst [vmem:[%s259] sm:$0xff] %v647
      %vm650 = vcmask 506880
      %651 = vst.msk [vmem:[%s259 + $0x8] sm:$0xff] %vm650, %v648
      %vm652 = vcmask 523760
      %653 = vst.msk [vmem:[%s259 + $0x8] sm:$0xff] %vm652, 0.0
      %656 = vrot.lane.b32.xlu0 %v647, 112
      %v657 = vpop.permute.xlu0 %656
      %658 = vrot.lane.b32.xlu0 %v648, 112
      %v659 = vpop.permute.xlu0 %658
      %vm660 = vcmask 916480
      %v661 = vsel %vm660, %v657, %v659
      %v664 = vmax.f32 %v647, %v661
      %v665 = vmax.f32 %v648, %v659
      %668 = vrot.lane.b32.xlu0 %v664, 127
      %v669 = vpop.permute.xlu0 %668
      %670 = vrot.lane.b32.xlu0 %v665, 127
      %v671 = vpop.permute.xlu0 %670
      %vm672 = vcmask 1039360
      %v673 = vsel %vm672, %v669, %v671
      %v676 = vmax.f32 %v664, %v673
      %v677 = vmax.f32 %v665, %v671
      %v678 = vpack.c.bf16 %v676, %v676
      %v679 = vpack.c.bf16 %v677, %v677
      %v682 = vunpack.c.l.b16 %v678
      %v683 = vunpack.c.l.b16 %v679
      %v684 = vpack.c.b16 %v683, %v682
      %vm686 = vcmask 367620
      %vm687 = vmor %vm686, %vm267
      %688 = vst.msk [vmem:[%s264] sm:$0xff] %vm687, %v684
      %vm689 = vcmask 388456
      %690 = vst.msk [vmem:[%s264 + $0x4] sm:$0xf] %vm689, 0
      %p691 = scmp.lt.s32.totalorder %s18, 1
      %s692 = scalar_select %p691, %s18, 1
      %s693 = smul.addr %s692, 2
      %s694 = smul.addr %s693, 8
      %s695 = scalar_lea.vmem %s5, %s694
      %p696 = scmp.lt.s32.totalorder %s18, 1
      %s697 = scalar_select %p696, %s18, 1
      %s698 = smul.addr %s697, 2
      %s699 = smul.addr %s698, 4
      %s700 = scalar_lea.vmem %s6, %s699
      // Predicated region
      $region41: #{encoder_forward.2} parent=39 // pred_check
        %p701 = pneg %p146
      $region42: #{encoder_forward.2} parent=39 // pred_check_branch
        %703 = sbr.rel (%p701) target = $region44
      $region43: #{encoder_forward.2} parent=39 // pred_region
        _
      $region44: #{encoder_forward.2} parent=39 // pred_fallthru
        _
      // Predicated region
      $region45: #{encoder_forward.2} parent=39 // pred_check
        %p704 = pneg %p172
      $region46: #{encoder_forward.2} parent=39 // pred_check_branch
        %706 = sbr.rel (%p704) target = $region48
      $region47: #{encoder_forward.2} parent=39 // pred_region
        _
      $region48: #{encoder_forward.2} parent=39 // pred_fallthru
        _
    $region40: #{encoder_forward.2} parent=5 // pred_fallthru
      _
    %p707 = scmp.le.s32.totalorder 2, %s13
    // Predicated region
    $region49: #{encoder_forward.2} parent=5 // pred_check
      %p708 = pneg %p707
    $region50: #{encoder_forward.2} parent=5 // pred_check_branch
      %710 = sbr.rel (%p708) target = $region52
    $region51: #{encoder_forward.2} parent=5 // pred_region
      %s711 = ssub.s32 %s13, 2
      // Predicated region
      $region53: #{encoder_forward.2} parent=51 // pred_check
        %p712 = pneg %p152
      $region54: #{encoder_forward.2} parent=51 // pred_check_branch
        %714 = sbr.rel (%p712) target = $region56
      $region55: #{encoder_forward.2} parent=51 // pred_region
        %p715 = scmp.lt.s32.totalorder %s19, 1
        %s716 = scalar_select %p715, %s19, 1
        %s717 = smul.addr %s716, 2
        %s718 = smul.addr %s717, 8
        %s719 = scalar_lea.vmem %s5, %s718
      $region56: #{encoder_forward.2} parent=51 // pred_fallthru
        _
      // Predicated region
      $region57: #{encoder_forward.2} parent=51 // pred_check
        %p720 = pneg %p178
      $region58: #{encoder_forward.2} parent=51 // pred_check_branch
        %722 = sbr.rel (%p720) target = $region60
      $region59: #{encoder_forward.2} parent=51 // pred_region
        %p723 = scmp.lt.s32.totalorder %s19, 1
        %s724 = scalar_select %p723, %s19, 1
        %s725 = smul.addr %s724, 2
        %s726 = smul.addr %s725, 4
        %s727 = scalar_lea.vmem %s6, %s726
      $region60: #{encoder_forward.2} parent=51 // pred_fallthru
        _
    $region52: #{encoder_forward.2} parent=5 // pred_fallthru
      _
  $region6: #{encoder_forward.2} parent=0 // loop_footer
    %s17 = sadd.s32 1, %s13
  $region7: #{encoder_forward.2} parent=0 // loop_footer_branch
    %12 = sbr.rel target = $region3
  $region8: #{encoder_forward.2} parent=0 // loop_exit
    _

</llo_original>
